<compile_context>
chip_gen: v5e
topology: v5e:2x2
jax: 0.10.0
libtpu: 0.0.40
codegen_flags: <defaults>
</compile_context>

<pallas_src>
import functools
import math

import jax
import jax.numpy as jnp
from jax.experimental import pallas as pl
from jax.experimental.pallas import tpu as pltpu


def _gelu_tanh(x):
    # tanh-approximate GELU (megablocks default activation_fn).
    c = math.sqrt(2.0 / math.pi)
    return 0.5 * x * (1.0 + jnp.tanh(c * (x + 0.044715 * x * x * x)))


def _mlp_lora_kernel(r, compute_dtype,
                     x_ref, w1_ref, w2_ref, lora_h_ref, lora_f_ref,
                     o_ref,
                     acc_ref, xa1_ref, ga2_ref):
    # grid = (expert, token-tile, ffn-tile); ffn-tile is the reduction axis.
    f = pl.program_id(2)
    nf = pl.num_programs(2)

    x = x_ref[0]                 # (tT, H)   resident across f
    w1 = w1_ref[0]               # (H, tF)
    w2 = w2_ref[0]               # (tF, H)
    lf = lora_f_ref[0]           # (2r, tF): [scale*B1^T ; A2^T], lane-dense
    b1s = lf[:r]                 # (r, tF)   already scaled
    a2 = lf[r:]                  # (r, tF)

    @pl.when(f == 0)
    def _init():
        acc_ref[...] = jnp.zeros_like(acc_ref)
        ga2_ref[...] = jnp.zeros_like(ga2_ref)
        # x @ A1^T depends only on (e, t): compute once per output tile.
        a1 = lora_h_ref[0][:r]   # (r, H)
        xa1_ref[...] = jax.lax.dot_general(
            x, a1,
            dimension_numbers=(((1,), (1,)), ((), ())),   # contract on H
            preferred_element_type=jnp.float32)

    # ---- first projection tile + LoRA delta (MXU, f32 accumulation) ----
    h = jnp.dot(x, w1, preferred_element_type=jnp.float32)
    h = h + jnp.dot(xa1_ref[...].astype(compute_dtype), b1s,
                    preferred_element_type=jnp.float32)

    # ---- activation (EUP tanh) in f32, single cast back for the MXU ----
    g = _gelu_tanh(h).astype(compute_dtype)

    # ---- second projection: accumulate across F tiles ----
    acc_ref[...] += jnp.dot(g, w2, preferred_element_type=jnp.float32)
    ga2_ref[...] += jax.lax.dot_general(
        g, a2,
        dimension_numbers=(((1,), (1,)), ((), ())),       # contract on tF
        preferred_element_type=jnp.float32)

    @pl.when(f == nf - 1)
    def _finalize():
        b2s = lora_h_ref[0][r:]  # (r, H)   already scaled
        lora2 = jnp.dot(ga2_ref[...].astype(compute_dtype), b2s,
                        preferred_element_type=jnp.float32)
        o_ref[0] = (acc_ref[...] + lora2).astype(o_ref.dtype)


def _mlp_merged_kernel(compute_dtype, x_ref, w1_ref, w2_ref, o_ref, acc_ref):
    # Frozen-adapter path: LoRA pre-merged into W1/W2 on the host, no rank-r work.
    f = pl.program_id(2)
    nf = pl.num_programs(2)

    @pl.when(f == 0)
    def _init():
        acc_ref[...] = jnp.zeros_like(acc_ref)

    h = jnp.dot(x_ref[0], w1_ref[0], preferred_element_type=jnp.float32)
    g = _gelu_tanh(h).astype(compute_dtype)
    acc_ref[...] += jnp.dot(g, w2_ref[0], preferred_element_type=jnp.float32)

    @pl.when(f == nf - 1)
    def _finalize():
        o_ref[0] = acc_ref[...].astype(o_ref.dtype)


def _pick_tile(n, cap, align=128):
    """Largest multiple of `align` that divides n and is <= cap, else n (full)."""
    if n <= cap:
        return n
    c = (cap // align) * align
    while c >= align:
        if n % c == 0:
            return c
        c -= align
    return n


def parallel_mlp_forward(x, w1, w2, a1, b1, a2, b2, lora_alpha, r,
                         *, compute_dtype=None, tile_t=None, tile_f=None,
                         merge_lora=False,
                         vmem_limit_bytes=56 * 1024 * 1024):
    """Grouped expert MLP forward with LoRA deltas.

    x : (E, T, H)    w1: (E, H, F)    w2: (E, F, H)
    a1: (E, H, r)    b1: (E, F, r)    a2: (E, F, r)    b2: (E, H, r)

    compute_dtype defaults to bfloat16 (MXU operands; accumulation is f32).
    Tile guidance: AI = tile_t flop/byte, so tile_t ~512 suffices on v5e/v7x,
    use 640-768 (and tile_f 1024-2048 with ~100 MiB vmem_limit) on v6e.
    """
    E, T, H = x.shape
    F = w1.shape[-1]
    scale = float(lora_alpha) / float(r)

    if compute_dtype is None:
        compute_dtype = jnp.bfloat16          # fast path on all generations
    compute_dtype = jnp.dtype(compute_dtype)

    tT = tile_t if tile_t is not None else _pick_tile(T, 512)
    tF = tile_f if tile_f is not None else _pick_tile(F, 512)
    assert T % tT == 0 and F % tF == 0, "tile sizes must divide T and F"
    # TODO(synk): no masked/ragged path yet — real MoE group sizes must be tile multiples.
    nT, nF = T // tT, F // tF

    f32 = jnp.float32
    cd_bytes = compute_dtype.itemsize
    out_bytes = jnp.dtype(x.dtype).itemsize

    x_c = x.astype(compute_dtype)
    out_shape = jax.ShapeDtypeStruct((E, T, H), x.dtype)
    compiler_params = pltpu.CompilerParams(
        dimension_semantics=("parallel", "parallel", "arbitrary"),
        vmem_limit_bytes=vmem_limit_bytes)

    if merge_lora:
        # Frozen-adapter inference: fold scale*A@B^T into the dense weights once
        # in XLA (f32), drop all LoRA refs / scratch / rank-8 MXU passes.
        hp = jax.lax.Precision.HIGHEST
        w1m = (w1.astype(f32)
               + scale * jnp.einsum("ehr,efr->ehf", a1.astype(f32),
                                    b1.astype(f32), precision=hp))
        w2m = (w2.astype(f32)
               + scale * jnp.einsum("efr,ehr->efh", a2.astype(f32),
                                    b2.astype(f32), precision=hp))
        w1_c = w1m.astype(compute_dtype)
        w2_c = w2m.astype(compute_dtype)

        flops = 2 * E * T * 2 * H * F
        bytes_accessed = (E * T * H * cd_bytes
                          + nT * E * 2 * H * F * cd_bytes   # weights re-streamed per token tile
                          + E * T * H * out_bytes)

        kernel = functools.partial(_mlp_merged_kernel, compute_dtype)
        return pl.pallas_call(
            kernel,
            out_shape=out_shape,
            grid_spec=pltpu.PrefetchScalarGridSpec(
                num_scalar_prefetch=0,
                grid=(E, nT, nF),
                in_specs=[
                    pl.BlockSpec((1, tT, H), lambda e, t, f: (e, t, 0)),  # x (resident over f)
                    pl.BlockSpec((1, H, tF), lambda e, t, f: (e, 0, f)),  # merged w1
                    pl.BlockSpec((1, tF, H), lambda e, t, f: (e, f, 0)),  # merged w2
                ],
                out_specs=pl.BlockSpec((1, tT, H), lambda e, t, f: (e, t, 0)),
                scratch_shapes=[pltpu.VMEM((tT, H), jnp.float32)]),
            compiler_params=compiler_params,
            cost_estimate=pl.CostEstimate(
                flops=flops, transcendentals=E * T * F,
                bytes_accessed=bytes_accessed),
        )(x_c, w1_c, w2_c)

    # ---- LoRA path: lane-dense, pre-scaled, concatenated adapter operands ----
    #   lora_h = [A1^T ; scale*B2^T] : (E, 2r, H)   (invariant over t and f per expert)
    #   lora_f = [scale*B1^T ; A2^T] : (E, 2r, F)   (tiled over f alongside w1/w2)
    # Scale is folded into B in f32 *before* the compute_dtype cast (accuracy +
    # removes the in-kernel mul).
    lora_h = jnp.concatenate(
        [jnp.swapaxes(a1, 1, 2).astype(f32),
         scale * jnp.swapaxes(b2, 1, 2).astype(f32)], axis=1).astype(compute_dtype)
    lora_f = jnp.concatenate(
        [scale * jnp.swapaxes(b1, 1, 2).astype(f32),
         jnp.swapaxes(a2, 1, 2).astype(f32)], axis=1).astype(compute_dtype)

    w1_c = w1.astype(compute_dtype)
    w2_c = w2.astype(compute_dtype)

    flops = 2 * E * T * (2 * H * F + H * r + r * F + F * r + r * H)
    bytes_accessed = (E * T * H * cd_bytes                       # x
                      + nT * E * 2 * H * F * cd_bytes            # w1/w2 re-streamed per token tile
                      + nT * E * 2 * r * F * cd_bytes            # lora_f re-streamed per token tile
                      + E * 2 * r * H * cd_bytes                 # lora_h, once per expert
                      + E * T * H * out_bytes)                   # output

    kernel = functools.partial(_mlp_lora_kernel, r, compute_dtype)

    return pl.pallas_call(
        kernel,
        out_shape=out_shape,
        grid_spec=pltpu.PrefetchScalarGridSpec(
            num_scalar_prefetch=0,
            grid=(E, nT, nF),
            # x / lora_h / output ignore the f axis -> kept resident across the
            # reduction (no re-DMA).  (They are also candidates for
            # pipeline_mode=pl.Buffered(1) to reclaim double-buffer VMEM.)
            in_specs=[
                pl.BlockSpec((1, tT, H), lambda e, t, f: (e, t, 0)),      # x
                pl.BlockSpec((1, H, tF), lambda e, t, f: (e, 0, f)),      # w1
                pl.BlockSpec((1, tF, H), lambda e, t, f: (e, f, 0)),      # w2
                pl.BlockSpec((1, 2 * r, H), lambda e, t, f: (e, 0, 0)),   # [A1^T ; s*B2^T]
                pl.BlockSpec((1, 2 * r, tF), lambda e, t, f: (e, 0, f)),  # [s*B1^T ; A2^T]
            ],
            out_specs=pl.BlockSpec((1, tT, H), lambda e, t, f: (e, t, 0)),
            scratch_shapes=[
                pltpu.VMEM((tT, H), jnp.float32),   # y accumulator
                pltpu.VMEM((tT, r), jnp.float32),   # x @ A1^T
                pltpu.VMEM((tT, r), jnp.float32),   # sum_f g @ A2^T
            ]),
        compiler_params=compiler_params,
        cost_estimate=pl.CostEstimate(
            flops=flops,
            transcendentals=E * T * F,
            bytes_accessed=bytes_accessed),
    )(x_c, w1_c, w2_c, lora_h, lora_f)


def _reference(x, w1, w2, a1, b1, a2, b2, lora_alpha, r):
    scale = lora_alpha / r
    hp = jax.lax.Precision.HIGHEST
    h = (jnp.einsum("eth,ehf->etf", x, w1, precision=hp)
         + scale * jnp.einsum("etr,efr->etf",
                              jnp.einsum("eth,ehr->etr", x, a1, precision=hp),
                              b1, precision=hp))
    g = _gelu_tanh(h)
    y = (jnp.einsum("etf,efh->eth", g, w2, precision=hp)
         + scale * jnp.einsum("etr,ehr->eth",
                              jnp.einsum("etf,efr->etr", g, a2, precision=hp),
                              b2, precision=hp))
    return y


if __name__ == "__main__":
    # Small synthetic config (grouped-expert layout): 2 experts per rank,
    # 256 tokens per expert, hidden 128, ffn 256, LoRA r=8, alpha=16.
    # tile_t=tile_f=128 exercises the (E, T_tiles, F_tiles) grid and the
    # F-axis accumulator path (grid = (2, 2, 2)).
    E, T, H, F, R = 2, 256, 128, 256, 8
    LORA_ALPHA = 16

    key = jax.random.PRNGKey(0)
    kx, k1, k2, ka1, kb1, ka2, kb2 = jax.random.split(key, 7)

    x = jax.random.normal(kx, (E, T, H), dtype=jnp.float32)
    w1 = jax.random.normal(k1, (E, H, F), dtype=jnp.float32) * 0.05
    w2 = jax.random.normal(k2, (E, F, H), dtype=jnp.float32) * 0.05
    # LoRA A: kaiming-ish; LoRA B: small non-zero so the low-rank path is
    # actually exercised (PEFT default init is zeros).
    a1 = jax.random.normal(ka1, (E, H, R), dtype=jnp.float32) * (1.0 / math.sqrt(H))
    b1 = jax.random.normal(kb1, (E, F, R), dtype=jnp.float32) * 0.01
    a2 = jax.random.normal(ka2, (E, F, R), dtype=jnp.float32) * (1.0 / math.sqrt(F))
    b2 = jax.random.normal(kb2, (E, H, R), dtype=jnp.float32) * 0.01

    ref = _reference(x, w1, w2, a1, b1, a2, b2, LORA_ALPHA, R)

    # f32 MXU path (tight tolerance).
    out = parallel_mlp_forward(x, w1, w2, a1, b1, a2, b2, LORA_ALPHA, R,
                               compute_dtype=jnp.float32,
                               tile_t=128, tile_f=128)
    out = jax.block_until_ready(out)
    assert out.shape == (E, T, H)
    assert jnp.allclose(out, ref, atol=2e-3, rtol=2e-3), \
        float(jnp.max(jnp.abs(out - ref)))

    # Default fast path: bf16 MXU operands with f32 accumulation (loose tolerance).
    out_bf16 = parallel_mlp_forward(x, w1, w2, a1, b1, a2, b2, LORA_ALPHA, R,
                                    tile_t=128, tile_f=128)
    out_bf16 = jax.block_until_ready(out_bf16)
    assert out_bf16.shape == (E, T, H)
    assert jnp.allclose(out_bf16, ref, atol=1e-1, rtol=1e-1), \
        float(jnp.max(jnp.abs(out_bf16 - ref)))

    # Frozen-adapter inference path: LoRA pre-merged into the dense weights.
    out_merged = parallel_mlp_forward(x, w1, w2, a1, b1, a2, b2, LORA_ALPHA, R,
                                      compute_dtype=jnp.float32, merge_lora=True,
                                      tile_t=128, tile_f=128)
    out_merged = jax.block_until_ready(out_merged)
    assert out_merged.shape == (E, T, H)
    assert jnp.allclose(out_merged, ref, atol=2e-3, rtol=2e-3), \
        float(jnp.max(jnp.abs(out_merged - ref)))

    print("KERNEL_OK")
</pallas_src>

<mosaic_0001>
module attributes {stable_mosaic.version = 11 : i64} {
  func.func @_mlp_lora_kernel(%arg0: i32, %arg1: i32, %arg2: i32, %arg3: memref<1x128x128xf32, #tpu.memory_space<vmem>>, %arg4: memref<1x128x128xf32, #tpu.memory_space<vmem>>, %arg5: memref<1x128x128xf32, #tpu.memory_space<vmem>>, %arg6: memref<1x16x128xf32, #tpu.memory_space<vmem>>, %arg7: memref<1x16x128xf32, #tpu.memory_space<vmem>>, %arg8: memref<1x128x128xf32, #tpu.memory_space<vmem>>, %arg9: memref<128x128xf32, #tpu.memory_space<vmem>>, %arg10: memref<128x8xf32, #tpu.memory_space<vmem>>, %arg11: memref<128x8xf32, #tpu.memory_space<vmem>>) attributes {dimension_semantics = [#tpu.dimension_semantics<parallel>, #tpu.dimension_semantics<parallel>, #tpu.dimension_semantics<arbitrary>], iteration_bounds = array<i64: 2, 2, 2>, scalar_prefetch = 0 : i64, scratch_operands = 3 : i64, tpu.core_type = #tpu.core_type<tc>, window_params = [{transform_indices = @transform_0, window_bounds = array<i64: 1, 128, 128>}, {transform_indices = @transform_1, window_bounds = array<i64: 1, 128, 128>}, {transform_indices = @transform_2, window_bounds = array<i64: 1, 128, 128>}, {transform_indices = @transform_3, window_bounds = array<i64: 1, 16, 128>}, {transform_indices = @transform_4, window_bounds = array<i64: 1, 16, 128>}, {transform_indices = @transform_5, window_bounds = array<i64: 1, 128, 128>}]} {
    %c0 = arith.constant 0 : index
    %c0_0 = arith.constant 0 : index
    %c0_1 = arith.constant 0 : index
    %0 = vector.load %arg3[%c0, %c0_0, %c0_1] : memref<1x128x128xf32, #tpu.memory_space<vmem>>, vector<1x128x128xf32>
    %1 = vector.shape_cast %0 : vector<1x128x128xf32> to vector<128x128xf32>
    %c0_2 = arith.constant 0 : index
    %c0_3 = arith.constant 0 : index
    %c0_4 = arith.constant 0 : index
    %2 = vector.load %arg4[%c0_2, %c0_3, %c0_4] : memref<1x128x128xf32, #tpu.memory_space<vmem>>, vector<1x128x128xf32>
    %3 = vector.shape_cast %2 : vector<1x128x128xf32> to vector<128x128xf32>
    %c0_5 = arith.constant 0 : index
    %c0_6 = arith.constant 0 : index
    %c0_7 = arith.constant 0 : index
    %4 = vector.load %arg5[%c0_5, %c0_6, %c0_7] : memref<1x128x128xf32, #tpu.memory_space<vmem>>, vector<1x128x128xf32>
    %5 = vector.shape_cast %4 : vector<1x128x128xf32> to vector<128x128xf32>
    %c0_8 = arith.constant 0 : index
    %c0_9 = arith.constant 0 : index
    %c0_10 = arith.constant 0 : index
    %6 = vector.load %arg7[%c0_8, %c0_9, %c0_10] : memref<1x16x128xf32, #tpu.memory_space<vmem>>, vector<1x16x128xf32>
    %7 = vector.shape_cast %6 : vector<1x16x128xf32> to vector<16x128xf32>
    %8 = vector.extract_strided_slice %7 {offsets = [0, 0], sizes = [8, 128], strides = [1, 1]} : vector<16x128xf32> to vector<8x128xf32>
    %9 = vector.extract_strided_slice %7 {offsets = [8, 0], sizes = [8, 128], strides = [1, 1]} : vector<16x128xf32> to vector<8x128xf32>
    %c0_i32 = arith.constant 0 : i32
    %10 = arith.cmpi eq, %arg2, %c0_i32 : i32
    %11 = arith.extui %10 : i1 to i32
    %c0_i32_11 = arith.constant 0 : i32
    %12 = arith.cmpi ne, %11, %c0_i32_11 : i32
    scf.if %12 {
      %cst_30 = arith.constant 0.000000e+00 : f32
      %41 = vector.broadcast %cst_30 : f32 to vector<128x128xf32>
      %c0_31 = arith.constant 0 : index
      %c0_32 = arith.constant 0 : index
      %42 = vector.load %arg9[%c0_31, %c0_32] : memref<128x128xf32, #tpu.memory_space<vmem>>, vector<128x128xf32>
      tpu.vector_store %arg9[%c0_31, %c0_32], %41 {strides = array<i32>} : memref<128x128xf32, #tpu.memory_space<vmem>>, vector<128x128xf32>,
      %cst_33 = arith.constant 0.000000e+00 : f32
      %43 = vector.broadcast %cst_33 : f32 to vector<128x8xf32>
      %c0_34 = arith.constant 0 : index
      %c0_35 = arith.constant 0 : index
      %44 = vector.load %arg11[%c0_34, %c0_35] : memref<128x8xf32, #tpu.memory_space<vmem>>, vector<128x8xf32>
      tpu.vector_store %arg11[%c0_34, %c0_35], %43 {strides = array<i32>} : memref<128x8xf32, #tpu.memory_space<vmem>>, vector<128x8xf32>,
      %c0_36 = arith.constant 0 : index
      %c0_37 = arith.constant 0 : index
      %c0_38 = arith.constant 0 : index
      %45 = vector.load %arg6[%c0_36, %c0_37, %c0_38] : memref<1x16x128xf32, #tpu.memory_space<vmem>>, vector<1x16x128xf32>
      %46 = vector.shape_cast %45 : vector<1x16x128xf32> to vector<16x128xf32>
      %47 = vector.extract_strided_slice %46 {offsets = [0, 0], sizes = [8, 128], strides = [1, 1]} : vector<16x128xf32> to vector<8x128xf32>
      %cst_39 = arith.constant dense<0.000000e+00> : vector<128x8xf32>
      %48 = tpu.matmul %1, %47, %cst_39 {dimension_numbers = #tpu.dot_dimension_numbers<[1], [1], [0], [0], [0, 0, 1, 0], [], []>} : vector<128x128xf32>, vector<8x128xf32>, vector<128x8xf32> -> vector<128x8xf32>
      %c0_40 = arith.constant 0 : index
      %c0_41 = arith.constant 0 : index
      %49 = vector.load %arg10[%c0_40, %c0_41] : memref<128x8xf32, #tpu.memory_space<vmem>>, vector<128x8xf32>
      tpu.vector_store %arg10[%c0_40, %c0_41], %48 {strides = array<i32>} : memref<128x8xf32, #tpu.memory_space<vmem>>, vector<128x8xf32>,
    } else {
    }
    %cst = arith.constant dense<0.000000e+00> : vector<128x128xf32>
    %13 = tpu.matmul %1, %3, %cst {dimension_numbers = #tpu.dot_dimension_numbers<[1], [0], [0], [1], [0, 0, 1, 1], [], []>} : vector<128x128xf32>, vector<128x128xf32>, vector<128x128xf32> -> vector<128x128xf32>
    %c0_12 = arith.constant 0 : index
    %c0_13 = arith.constant 0 : index
    %14 = vector.load %arg10[%c0_12, %c0_13] : memref<128x8xf32, #tpu.memory_space<vmem>>, vector<128x8xf32>
    %cst_14 = arith.constant dense<0.000000e+00> : vector<128x128xf32>
    %15 = tpu.matmul %14, %8, %cst_14 {dimension_numbers = #tpu.dot_dimension_numbers<[1], [0], [0], [1], [0, 0, 1, 1], [], []>} : vector<128x8xf32>, vector<8x128xf32>, vector<128x128xf32> -> vector<128x128xf32>
    %16 = arith.addf %13, %15 : vector<128x128xf32>
    %cst_15 = arith.constant 5.000000e-01 : f32
    %17 = vector.broadcast %cst_15 : f32 to vector<128x128xf32>
    %18 = arith.mulf %17, %16 : vector<128x128xf32>
    %cst_16 = arith.constant 4.471500e-02 : f32
    %19 = vector.broadcast %cst_16 : f32 to vector<128x128xf32>
    %20 = arith.mulf %19, %16 : vector<128x128xf32>
    %21 = arith.mulf %20, %16 : vector<128x128xf32>
    %22 = arith.mulf %21, %16 : vector<128x128xf32>
    %23 = arith.addf %16, %22 : vector<128x128xf32>
    %cst_17 = arith.constant 0.797884583 : f32
    %24 = vector.broadcast %cst_17 : f32 to vector<128x128xf32>
    %25 = arith.mulf %24, %23 : vector<128x128xf32>
    %26 = math.tanh %25 : vector<128x128xf32>
    %cst_18 = arith.constant 1.000000e+00 : f32
    %27 = vector.broadcast %cst_18 : f32 to vector<128x128xf32>
    %28 = arith.addf %27, %26 : vector<128x128xf32>
    %29 = arith.mulf %18, %28 : vector<128x128xf32>
    %c0_19 = arith.constant 0 : index
    %c0_20 = arith.constant 0 : index
    %30 = vector.load %arg9[%c0_19, %c0_20] : memref<128x128xf32, #tpu.memory_space<vmem>>, vector<128x128xf32>
    %cst_21 = arith.constant dense<0.000000e+00> : vector<128x128xf32>
    %31 = tpu.matmul %29, %5, %cst_21 {dimension_numbers = #tpu.dot_dimension_numbers<[1], [0], [0], [1], [0, 0, 1, 1], [], []>} : vector<128x128xf32>, vector<128x128xf32>, vector<128x128xf32> -> vector<128x128xf32>
    %32 = arith.addf %30, %31 : vector<128x128xf32>
    %c0_22 = arith.constant 0 : index
    %c0_23 = arith.constant 0 : index
    %33 = vector.load %arg9[%c0_22, %c0_23] : memref<128x128xf32, #tpu.memory_space<vmem>>, vector<128x128xf32>
    tpu.vector_store %arg9[%c0_22, %c0_23], %32 {strides = array<i32>} : memref<128x128xf32, #tpu.memory_space<vmem>>, vector<128x128xf32>,
    %c0_24 = arith.constant 0 : index
    %c0_25 = arith.constant 0 : index
    %34 = vector.load %arg11[%c0_24, %c0_25] : memref<128x8xf32, #tpu.memory_space<vmem>>, vector<128x8xf32>
    %cst_26 = arith.constant dense<0.000000e+00> : vector<128x8xf32>
    %35 = tpu.matmul %29, %9, %cst_26 {dimension_numbers = #tpu.dot_dimension_numbers<[1], [1], [0], [0], [0, 0, 1, 0], [], []>} : vector<128x128xf32>, vector<8x128xf32>, vector<128x8xf32> -> vector<128x8xf32>
    %36 = arith.addf %34, %35 : vector<128x8xf32>
    %c0_27 = arith.constant 0 : index
    %c0_28 = arith.constant 0 : index
    %37 = vector.load %arg11[%c0_27, %c0_28] : memref<128x8xf32, #tpu.memory_space<vmem>>, vector<128x8xf32>
    tpu.vector_store %arg11[%c0_27, %c0_28], %36 {strides = array<i32>} : memref<128x8xf32, #tpu.memory_space<vmem>>, vector<128x8xf32>,
    %c1_i32 = arith.constant 1 : i32
    %38 = arith.cmpi eq, %arg2, %c1_i32 : i32
    %39 = arith.extui %38 : i1 to i32
    %c0_i32_29 = arith.constant 0 : i32
    %40 = arith.cmpi ne, %39, %c0_i32_29 : i32
    scf.if %40 {
      %c0_30 = arith.constant 0 : index
      %c0_31 = arith.constant 0 : index
      %c0_32 = arith.constant 0 : index
      %41 = vector.load %arg6[%c0_30, %c0_31, %c0_32] : memref<1x16x128xf32, #tpu.memory_space<vmem>>, vector<1x16x128xf32>
      %42 = vector.shape_cast %41 : vector<1x16x128xf32> to vector<16x128xf32>
      %43 = vector.extract_strided_slice %42 {offsets = [8, 0], sizes = [8, 128], strides = [1, 1]} : vector<16x128xf32> to vector<8x128xf32>
      %c0_33 = arith.constant 0 : index
      %c0_34 = arith.constant 0 : index
      %44 = vector.load %arg11[%c0_33, %c0_34] : memref<128x8xf32, #tpu.memory_space<vmem>>, vector<128x8xf32>
      %cst_35 = arith.constant dense<0.000000e+00> : vector<128x128xf32>
      %45 = tpu.matmul %44, %43, %cst_35 {dimension_numbers = #tpu.dot_dimension_numbers<[1], [0], [0], [1], [0, 0, 1, 1], [], []>} : vector<128x8xf32>, vector<8x128xf32>, vector<128x128xf32> -> vector<128x128xf32>
      %c0_36 = arith.constant 0 : index
      %c0_37 = arith.constant 0 : index
      %46 = vector.load %arg9[%c0_36, %c0_37] : memref<128x128xf32, #tpu.memory_space<vmem>>, vector<128x128xf32>
      %47 = arith.addf %46, %45 : vector<128x128xf32>
      %c0_38 = arith.constant 0 : index
      %c0_39 = arith.constant 0 : index
      %c0_40 = arith.constant 0 : index
      %48 = vector.load %arg8[%c0_38, %c0_39, %c0_40] : memref<1x128x128xf32, #tpu.memory_space<vmem>>, vector<1x128x128xf32>
      %49 = vector.shape_cast %48 : vector<1x128x128xf32> to vector<128x128xf32>
      %50 = vector.shape_cast %47 : vector<128x128xf32> to vector<1x128x128xf32>
      tpu.vector_store %arg8[%c0_38, %c0_39, %c0_40], %50 {strides = array<i32>} : memref<1x128x128xf32, #tpu.memory_space<vmem>>, vector<1x128x128xf32>,
    } else {
    }
    return
  }
  func.func @transform_0(%arg0: i32, %arg1: i32, %arg2: i32) -> (i32, i32, i32) {
    %c0_i32 = arith.constant 0 : i32
    %c0_i32_0 = arith.constant 0 : i32
    return %arg0, %arg1, %c0_i32 : i32, i32, i32
  }
  func.func @transform_1(%arg0: i32, %arg1: i32, %arg2: i32) -> (i32, i32, i32) {
    %c0_i32 = arith.constant 0 : i32
    %c0_i32_0 = arith.constant 0 : i32
    return %arg0, %c0_i32, %arg2 : i32, i32, i32
  }
  func.func @transform_2(%arg0: i32, %arg1: i32, %arg2: i32) -> (i32, i32, i32) {
    %c0_i32 = arith.constant 0 : i32
    %c0_i32_0 = arith.constant 0 : i32
    return %arg0, %arg2, %c0_i32 : i32, i32, i32
  }
  func.func @transform_3(%arg0: i32, %arg1: i32, %arg2: i32) -> (i32, i32, i32) {
    %c0_i32 = arith.constant 0 : i32
    %c0_i32_0 = arith.constant 0 : i32
    %c0_i32_1 = arith.constant 0 : i32
    return %arg0, %c0_i32, %c0_i32_0 : i32, i32, i32
  }
  func.func @transform_4(%arg0: i32, %arg1: i32, %arg2: i32) -> (i32, i32, i32) {
    %c0_i32 = arith.constant 0 : i32
    %c0_i32_0 = arith.constant 0 : i32
    return %arg0, %c0_i32, %arg2 : i32, i32, i32
  }
  func.func @transform_5(%arg0: i32, %arg1: i32, %arg2: i32) -> (i32, i32, i32) {
    %c0_i32 = arith.constant 0 : i32
    %c0_i32_0 = arith.constant 0 : i32
    return %arg0, %arg1, %c0_i32 : i32, i32, i32
  }
}

</mosaic_0001>

<llo_original>
// kernel: tpu_custom_call.1
$region0: #{tpu_custom_call.1}
  #allocation0 [shape = 'u32[]', space=smem, size = 0x4, offset = 0x4, fixed_abs, tag = 'smem constant byte address 0x4 - core index']
  #allocation1 [shape = 'u32[72,128]{1,0:T(1,128)}', space=vmem, size = 0x9000, scoped, tag = 'internal scratch']
  #allocation2 [shape = 'f32[128,128]{1,0:T(8,128)}', space=vmem, size = 0x10000, scoped, tag = 'scratch operand']
  #allocation3 [shape = 'f32[128,8]{1,0:T(8,128)}', space=vmem, size = 0x10000, scoped, tag = 'scratch operand']
  #allocation4 [shape = 'f32[128,8]{1,0:T(8,128)}', space=vmem, size = 0x10000, scoped, tag = 'scratch operand']
  %s0 = inlined_call_operand.hbm [shape: f32[2,256,128], index: 0, kind: input, shape index: {}]
  %s1 = inlined_call_operand.hbm [shape: f32[2,128,256], index: 1, kind: input, shape index: {}]
  %s2 = inlined_call_operand.hbm [shape: f32[2,256,128], index: 2, kind: input, shape index: {}]
  %s3 = inlined_call_operand.hbm [shape: f32[2,16,128], index: 3, kind: input, shape index: {}]
  %s4 = inlined_call_operand.hbm [shape: f32[2,16,256], index: 4, kind: input, shape index: {}]
  %s5 = inlined_call_operand.hbm [shape: f32[2,256,128], index: 5, kind: output, shape index: {}]
  %s6 = sld [smem:[#allocation0]]
  $region81: #{tpu_custom_call.1} parent=0
    _
  %s8 = ssub.s32 1, %s6
  %s9 = scalar_select 0, %s8, %s6
  $region1: #{tpu_custom_call.1} parent=0
    #allocation5 [shape = 'u8[131072]{0}', space=vmem, size = 0x20000, scoped, tag = 'input window, operand 0']
    #allocation6 [shape = 's32[2]{0}', space=sflag, size = 0x8, scoped, tag = 'scoped memory for tpu_custom_call.1']
    #allocation7 [shape = 's32[2]{0}', space=sflag, size = 0x8, scoped, tag = 'scoped memory for tpu_custom_call.1']
    #allocation8 [shape = 'u8[131072]{0}', space=vmem, size = 0x20000, scoped, tag = 'input window, operand 1']
    #allocation9 [shape = 's32[2]{0}', space=sflag, size = 0x8, scoped, tag = 'scoped memory for tpu_custom_call.1']
    #allocation10 [shape = 'u8[131072]{0}', space=vmem, size = 0x20000, scoped, tag = 'input window, operand 2']
    #allocation11 [shape = 'u8[16384]{0}', space=vmem, size = 0x4000, scoped, tag = 'input window, operand 3']
    #allocation12 [shape = 's32[2]{0}', space=sflag, size = 0x8, scoped, tag = 'scoped memory for tpu_custom_call.1']
    #allocation13 [shape = 'u8[16384]{0}', space=vmem, size = 0x4000, scoped, tag = 'input window, operand 4']
    #allocation14 [shape = 'u8[131072]{0}', space=vmem, size = 0x20000, scoped, tag = 'output window, operand 0']
    %10 = vsyncpa [#allocation6], 0
    %s11 = scalar_lea.sflag [#allocation6], 1
    %12 = vsyncpa %s11, 0
    %13 = vsyncpa [#allocation9], 0
    %s14 = scalar_lea.sflag [#allocation9], 1
    %15 = vsyncpa %s14, 0
    %16 = vsyncpa [#allocation12], 0
    %s17 = scalar_lea.sflag [#allocation12], 1
    %18 = vsyncpa %s17, 0
    %19 = vsyncpa [#allocation7], 0
    %s20 = scalar_lea.sflag [#allocation7], 1
    %21 = vsyncpa %s20, 0
    loop: start=0, step=1, limit=10
    $region2: #{tpu_custom_call.1} parent=1 // loop_pre_header
      _
    $region3: #{tpu_custom_call.1} parent=1 // loop_header
      %s23 = sphi 0, %s27
      %p24 = scmp.ge.s32.totalorder %s23, 10
      %s30 = sphi 0, %s49
      %s31 = sphi 0, %s45
      %s32 = sphi 0, %s41
      %s33 = sphi 0, %s30
      %s34 = sphi 0, %s31
      %s35 = sphi 0, %s32
      %s36 = sphi 0, %s33
      %s37 = sphi 0, %s34
      %s38 = sphi 0, %s35
      %s54 = sphi 0, %s56
      %s57 = sphi 0, %s54
      %s58 = sphi 0, %s57
      %s74 = sphi 0, %s58
      %s82 = sphi 0, %s84
      %s85 = sphi 0, %s82
      %s86 = sphi 0, %s85
      %s102 = sphi 0, %s86
      %s110 = sphi 0, %s112
      %s113 = sphi 0, %s110
      %s114 = sphi 0, %s113
      %s130 = sphi 0, %s114
      %s136 = sphi 0, %s138
      %s139 = sphi 0, %s136
      %s140 = sphi 0, %s139
      %s156 = sphi 0, %s140
      %s164 = sphi 0, %s166
      %s167 = sphi 0, %s164
      %s168 = sphi 0, %s167
      %s184 = sphi 0, %s168
      %s192 = sphi 0, %s194
      %s195 = sphi 0, %s192
      %s196 = sphi 0, %s195
      %s212 = sphi 0, %s196
    $region4: #{tpu_custom_call.1} parent=1 // loop_header_branch
      %26 = sbr.rel (%p24) target = $region8
    $region5: #{tpu_custom_call.1} parent=1 // loop_body
      %s28 = ssub.s32 %s23, 1
      %s29 = ssub.s32 %s23, 2
      %s39 = sadd.s32 1, %s32
      %p40 = scmp.ge.s32.totalorder %s39, 2
      %s41 = scalar_select %p40, 0, %s39
      %s42 = sadd.s32 1, %s31
      %s43 = scalar_select %p40, %s42, %s31
      %p44 = scmp.ge.s32.totalorder %s43, 2
      %s45 = scalar_select %p44, 0, %s43
      %s46 = sadd.s32 1, %s30
      %s47 = scalar_select %p44, %s46, %s30
      %p48 = scmp.ge.s32.totalorder %s47, 2
      %s49 = scalar_select %p48, 0, %s47
      %s50 = ssub.s32 %s30, %s49
      %s51 = ssub.s32 %s31, %s45
      %s52 = sor.u32 %s50, %s51
      %p53 = scmp.eq.s32.totalorder %s52, 0
      %s55 = sadd.s32 %s54, 1
      %s56 = scalar_select %p53, %s54, %s55
      %p59 = pneg %p53
      %p60 = scmp.eq.s32.totalorder %s23, 7
      %p61 = por %p59, %p60
      %p62 = scmp.ne.s32.totalorder %s54, %s57
      %p63 = scmp.eq.s32.totalorder %s23, 0
      %p64 = por %p62, %p63
      %p65 = scmp.ne.s32.totalorder %s54, %s57
      %p66 = scmp.eq.s32.totalorder %s28, 7
      %p67 = por %p65, %p66
      %p68 = scmp.ne.s32.totalorder %s57, %s58
      %p69 = scmp.eq.s32.totalorder %s28, 0
      %p70 = por %p68, %p69
      %p71 = scmp.ne.s32.totalorder %s57, %s58
      %p72 = scmp.eq.s32.totalorder %s29, 7
      %p73 = por %p71, %p72
      %p75 = scmp.ne.s32.totalorder %s58, %s74
      %p76 = scmp.eq.s32.totalorder %s29, 0
      %p77 = por %p75, %p76
      %s78 = ssub.s32 %s30, %s49
      %s79 = ssub.s32 %s32, %s41
      %s80 = sor.u32 %s78, %s79
      %p81 = scmp.eq.s32.totalorder %s80, 0
      %s83 = sadd.s32 %s82, 1
      %s84 = scalar_select %p81, %s82, %s83
      %p87 = pneg %p81
      %p88 = scmp.eq.s32.totalorder %s23, 7
      %p89 = por %p87, %p88
      %p90 = scmp.ne.s32.totalorder %s82, %s85
      %p91 = scmp.eq.s32.totalorder %s23, 0
      %p92 = por %p90, %p91
      %p93 = scmp.ne.s32.totalorder %s82, %s85
      %p94 = scmp.eq.s32.totalorder %s28, 7
      %p95 = por %p93, %p94
      %p96 = scmp.ne.s32.totalorder %s85, %s86
      %p97 = scmp.eq.s32.totalorder %s28, 0
      %p98 = por %p96, %p97
      %p99 = scmp.ne.s32.totalorder %s85, %s86
      %p100 = scmp.eq.s32.totalorder %s29, 7
      %p101 = por %p99, %p100
      %p103 = scmp.ne.s32.totalorder %s86, %s102
      %p104 = scmp.eq.s32.totalorder %s29, 0
      %p105 = por %p103, %p104
      %s106 = ssub.s32 %s30, %s49
      %s107 = ssub.s32 %s32, %s41
      %s108 = sor.u32 %s106, %s107
      %p109 = scmp.eq.s32.totalorder %s108, 0
      %s111 = sadd.s32 %s110, 1
      %s112 = scalar_select %p109, %s110, %s111
      %p115 = pneg %p109
      %p116 = scmp.eq.s32.totalorder %s23, 7
      %p117 = por %p115, %p116
      %p118 = scmp.ne.s32.totalorder %s110, %s113
      %p119 = scmp.eq.s32.totalorder %s23, 0
      %p120 = por %p118, %p119
      %p121 = scmp.ne.s32.totalorder %s110, %s113
      %p122 = scmp.eq.s32.totalorder %s28, 7
      %p123 = por %p121, %p122
      %p124 = scmp.ne.s32.totalorder %s113, %s114
      %p125 = scmp.eq.s32.totalorder %s28, 0
      %p126 = por %p124, %p125
      %p127 = scmp.ne.s32.totalorder %s113, %s114
      %p128 = scmp.eq.s32.totalorder %s29, 7
      %p129 = por %p127, %p128
      %p131 = scmp.ne.s32.totalorder %s114, %s130
      %p132 = scmp.eq.s32.totalorder %s29, 0
      %p133 = por %p131, %p132
      %s134 = ssub.s32 %s30, %s49
      %p135 = scmp.eq.s32.totalorder %s134, 0
      %s137 = sadd.s32 %s136, 1
      %s138 = scalar_select %p135, %s136, %s137
      %p141 = pneg %p135
      %p142 = scmp.eq.s32.totalorder %s23, 7
      %p143 = por %p141, %p142
      %p144 = scmp.ne.s32.totalorder %s136, %s139
      %p145 = scmp.eq.s32.totalorder %s23, 0
      %p146 = por %p144, %p145
      %p147 = scmp.ne.s32.totalorder %s136, %s139
      %p148 = scmp.eq.s32.totalorder %s28, 7
      %p149 = por %p147, %p148
      %p150 = scmp.ne.s32.totalorder %s139, %s140
      %p151 = scmp.eq.s32.totalorder %s28, 0
      %p152 = por %p150, %p151
      %p153 = scmp.ne.s32.totalorder %s139, %s140
      %p154 = scmp.eq.s32.totalorder %s29, 7
      %p155 = por %p153, %p154
      %p157 = scmp.ne.s32.totalorder %s140, %s156
      %p158 = scmp.eq.s32.totalorder %s29, 0
      %p159 = por %p157, %p158
      %s160 = ssub.s32 %s30, %s49
      %s161 = ssub.s32 %s32, %s41
      %s162 = sor.u32 %s160, %s161
      %p163 = scmp.eq.s32.totalorder %s162, 0
      %s165 = sadd.s32 %s164, 1
      %s166 = scalar_select %p163, %s164, %s165
      %p169 = pneg %p163
      %p170 = scmp.eq.s32.totalorder %s23, 7
      %p171 = por %p169, %p170
      %p172 = scmp.ne.s32.totalorder %s164, %s167
      %p173 = scmp.eq.s32.totalorder %s23, 0
      %p174 = por %p172, %p173
      %p175 = scmp.ne.s32.totalorder %s164, %s167
      %p176 = scmp.eq.s32.totalorder %s28, 7
      %p177 = por %p175, %p176
      %p178 = scmp.ne.s32.totalorder %s167, %s168
      %p179 = scmp.eq.s32.totalorder %s28, 0
      %p180 = por %p178, %p179
      %p181 = scmp.ne.s32.totalorder %s167, %s168
      %p182 = scmp.eq.s32.totalorder %s29, 7
      %p183 = por %p181, %p182
      %p185 = scmp.ne.s32.totalorder %s168, %s184
      %p186 = scmp.eq.s32.totalorder %s29, 0
      %p187 = por %p185, %p186
      %s188 = ssub.s32 %s30, %s49
      %s189 = ssub.s32 %s31, %s45
      %s190 = sor.u32 %s188, %s189
      %p191 = scmp.eq.s32.totalorder %s190, 0
      %s193 = sadd.s32 %s192, 1
      %s194 = scalar_select %p191, %s192, %s193
      %p197 = pneg %p191
      %p198 = scmp.eq.s32.totalorder %s23, 7
      %p199 = por %p197, %p198
      %p200 = scmp.ne.s32.totalorder %s192, %s195
      %p201 = scmp.eq.s32.totalorder %s23, 0
      %p202 = por %p200, %p201
      %p203 = scmp.ne.s32.totalorder %s192, %s195
      %p204 = scmp.eq.s32.totalorder %s28, 7
      %p205 = por %p203, %p204
      %p206 = scmp.ne.s32.totalorder %s195, %s196
      %p207 = scmp.eq.s32.totalorder %s28, 0
      %p208 = por %p206, %p207
      %p209 = scmp.ne.s32.totalorder %s195, %s196
      %p210 = scmp.eq.s32.totalorder %s29, 7
      %p211 = por %p209, %p210
      %p213 = scmp.ne.s32.totalorder %s196, %s212
      %p214 = scmp.eq.s32.totalorder %s29, 0
      %p215 = por %p213, %p214
      %p216 = scmp.le.s32.totalorder 1, %s23
      %p217 = scmp.lt.s32.totalorder %s23, 9
      %p218 = pnand %p216, %p217
      %p219 = pneg %p218
      // Predicated region
      $region9: #{tpu_custom_call.1} parent=5 // pred_check
        _
      $region10: #{tpu_custom_call.1} parent=5 // pred_check_branch
        %221 = sbr.rel (%p218) target = $region12
      $region11: #{tpu_custom_call.1} parent=5 // pred_region
        %s222 = ssub.s32 %s23, 1
      $region12: #{tpu_custom_call.1} parent=5 // pred_fallthru
        _
      %p223 = scmp.lt.s32.totalorder %s23, 8
      // Predicated region
      $region13: #{tpu_custom_call.1} parent=5 // pred_check
        %p224 = pneg %p223
      $region14: #{tpu_custom_call.1} parent=5 // pred_check_branch
        %226 = sbr.rel (%p224) target = $region16
      $region15: #{tpu_custom_call.1} parent=5 // pred_region
        // Predicated region
        $region17: #{tpu_custom_call.1} parent=15 // pred_check
          %p227 = pneg %p64
        $region18: #{tpu_custom_call.1} parent=15 // pred_check_branch
          %229 = sbr.rel (%p227) target = $region20
        $region19: #{tpu_custom_call.1} parent=15 // pred_region
          %s230 = sand.u32 %s54, 1
          %s231 = scalar_lea.sflag [#allocation6], %s230
          %s232 = sand.u32 %s54, 1
          %s233 = smul.addr %s232, 128
          %s234 = scalar_lea.vmem [#allocation5], %s233
          %s235 = smul.u32 16, %s31
          %237 = vsyncadd %s231, 0
          %s238 = smul.addr %s30, 32
          %s239 = sadd.s32 %s235, %s238
          %s240 = smul.addr %s239, 8
          %s241 = scalar_lea.hbm %s0, %s240
          %s242 = sshll.u32 %s241, 4
          %s243 = int_to_ptr.hbm [resolvable:$true] %s242
          %s244 = sshll.u32 %s234, 4
          %s245 = int_to_ptr.vmem [resolvable:$true] %s244
          %250 = dma.hbm_to_vmem [thread:$0]  %s243, 2048, %s245, %s231, 128, 128, 8
        $region20: #{tpu_custom_call.1} parent=15 // pred_fallthru
          _
        // Predicated region
        $region21: #{tpu_custom_call.1} parent=15 // pred_check
          %p251 = pneg %p92
        $region22: #{tpu_custom_call.1} parent=15 // pred_check_branch
          %253 = sbr.rel (%p251) target = $region24
        $region23: #{tpu_custom_call.1} parent=15 // pred_region
          %s254 = sand.u32 %s23, 1
          %s255 = scalar_lea.sflag [#allocation9], %s254
          %s256 = sand.u32 %s82, 1
          %s257 = smul.addr %s256, 128
          %s258 = scalar_lea.vmem [#allocation8], %s257
          %260 = vsyncadd %s255, 0
          %s261 = smul.addr %s30, 32
          %s262 = sadd.s32 %s32, %s261
          %s263 = smul.addr %s262, 8
          %s264 = scalar_lea.hbm %s1, %s263
          %s265 = sshll.u32 %s264, 4
          %s266 = int_to_ptr.hbm [resolvable:$true] %s265
          %s267 = sshll.u32 %s258, 4
          %s268 = int_to_ptr.vmem [resolvable:$true] %s267
          %273 = dma.hbm_to_vmem [thread:$0]  %s266, 2048, %s268, %s255, 256, 128, 8
        $region24: #{tpu_custom_call.1} parent=15 // pred_fallthru
          _
        // Predicated region
        $region25: #{tpu_custom_call.1} parent=15 // pred_check
          %p274 = pneg %p120
        $region26: #{tpu_custom_call.1} parent=15 // pred_check_branch
          %276 = sbr.rel (%p274) target = $region28
        $region27: #{tpu_custom_call.1} parent=15 // pred_region
          %s277 = sand.u32 %s23, 1
          %s278 = scalar_lea.sflag [#allocation9], %s277
          %s279 = sand.u32 %s110, 1
          %s280 = smul.addr %s279, 128
          %s281 = scalar_lea.vmem [#allocation10], %s280
          %s282 = smul.u32 16, %s32
          %284 = vsyncadd %s278, 0
          %s285 = smul.addr %s30, 32
          %s286 = sadd.s32 %s282, %s285
          %s287 = smul.addr %s286, 8
          %s288 = scalar_lea.hbm %s2, %s287
          %s289 = sshll.u32 %s288, 4
          %s290 = int_to_ptr.hbm [resolvable:$true] %s289
          %s291 = sshll.u32 %s281, 4
          %s292 = int_to_ptr.vmem [resolvable:$true] %s291
          %297 = dma.hbm_to_vmem [thread:$0]  %s290, 2048, %s292, %s278, 128, 128, 8
        $region28: #{tpu_custom_call.1} parent=15 // pred_fallthru
          _
        // Predicated region
        $region29: #{tpu_custom_call.1} parent=15 // pred_check
          %p298 = pneg %p146
        $region30: #{tpu_custom_call.1} parent=15 // pred_check_branch
          %300 = sbr.rel (%p298) target = $region32
        $region31: #{tpu_custom_call.1} parent=15 // pred_region
          %s301 = sand.u32 %s23, 1
          %s302 = scalar_lea.sflag [#allocation12], %s301
          %s303 = sand.u32 %s136, 1
          %s304 = smul.addr %s303, 16
          %s305 = scalar_lea.vmem [#allocation11], %s304
          %307 = vsyncadd %s302, 0
          %s308 = smul.addr %s30, 2
          %s309 = smul.addr %s308, 8
          %s310 = scalar_lea.hbm %s3, %s309
          %s311 = sshll.u32 %s310, 4
          %s312 = int_to_ptr.hbm [resolvable:$true] %s311
          %s313 = sshll.u32 %s305, 4
          %s314 = int_to_ptr.vmem [resolvable:$true] %s313
          %319 = dma.hbm_to_vmem [thread:$0]  %s312, 256, %s314, %s302, 128, 128, 8
        $region32: #{tpu_custom_call.1} parent=15 // pred_fallthru
          _
        // Predicated region
        $region33: #{tpu_custom_call.1} parent=15 // pred_check
          %p320 = pneg %p174
        $region34: #{tpu_custom_call.1} parent=15 // pred_check_branch
          %322 = sbr.rel (%p320) target = $region36
        $region35: #{tpu_custom_call.1} parent=15 // pred_region
          %s323 = sand.u32 %s23, 1
          %s324 = scalar_lea.sflag [#allocation12], %s323
          %s325 = sand.u32 %s164, 1
          %s326 = smul.addr %s325, 16
          %s327 = scalar_lea.vmem [#allocation13], %s326
          %329 = vsyncadd %s324, 0
          %s330 = smul.addr %s30, 4
          %s331 = sadd.s32 %s32, %s330
          %s332 = smul.addr %s331, 8
          %s333 = scalar_lea.hbm %s4, %s332
          %s334 = sshll.u32 %s333, 4
          %s335 = int_to_ptr.hbm [resolvable:$true] %s334
          %s336 = sshll.u32 %s327, 4
          %s337 = int_to_ptr.vmem [resolvable:$true] %s336
          %342 = dma.hbm_to_vmem [thread:$0]  %s335, 256, %s337, %s324, 256, 128, 8
        $region36: #{tpu_custom_call.1} parent=15 // pred_fallthru
          _
      $region16: #{tpu_custom_call.1} parent=5 // pred_fallthru
        _
      %p343 = scmp.le.s32.totalorder 1, %s23
      %p344 = scmp.lt.s32.totalorder %s23, 9
      %p345 = pnand %p343, %p344
      %p346 = pneg %p345
      // Predicated region
      $region37: #{tpu_custom_call.1} parent=5 // pred_check
        _
      $region38: #{tpu_custom_call.1} parent=5 // pred_check_branch
        %348 = sbr.rel (%p345) target = $region40
      $region39: #{tpu_custom_call.1} parent=5 // pred_region
        %s349 = ssub.s32 %s23, 1
        %s350 = sand.u32 %s57, 1
        %s351 = scalar_lea.sflag [#allocation6], %s350
        %s352 = sand.u32 %s57, 1
        %s353 = smul.addr %s352, 128
        %s354 = scalar_lea.vmem [#allocation5], %s353
        // Predicated region
        $region41: #{tpu_custom_call.1} parent=39 // pred_check
          %p355 = pneg %p70
        $region42: #{tpu_custom_call.1} parent=39 // pred_check_branch
          %357 = sbr.rel (%p355) target = $region44
        $region43: #{tpu_custom_call.1} parent=39 // pred_region
          %359 = dma.done %s351, 2048
        $region44: #{tpu_custom_call.1} parent=39 // pred_fallthru
          _
        %s360 = sand.u32 %s28, 1
        %s361 = scalar_lea.sflag [#allocation9], %s360
        %s362 = sand.u32 %s85, 1
        %s363 = smul.addr %s362, 128
        %s364 = scalar_lea.vmem [#allocation8], %s363
        // Predicated region
        $region45: #{tpu_custom_call.1} parent=39 // pred_check
          %p365 = pneg %p98
        $region46: #{tpu_custom_call.1} parent=39 // pred_check_branch
          %367 = sbr.rel (%p365) target = $region48
        $region47: #{tpu_custom_call.1} parent=39 // pred_region
          %369 = dma.done %s361, 2048
        $region48: #{tpu_custom_call.1} parent=39 // pred_fallthru
          _
        %s370 = sand.u32 %s28, 1
        %s371 = scalar_lea.sflag [#allocation9], %s370
        %s372 = sand.u32 %s113, 1
        %s373 = smul.addr %s372, 128
        %s374 = scalar_lea.vmem [#allocation10], %s373
        // Predicated region
        $region49: #{tpu_custom_call.1} parent=39 // pred_check
          %p375 = pneg %p126
        $region50: #{tpu_custom_call.1} parent=39 // pred_check_branch
          %377 = sbr.rel (%p375) target = $region52
        $region51: #{tpu_custom_call.1} parent=39 // pred_region
          %379 = dma.done %s371, 2048
        $region52: #{tpu_custom_call.1} parent=39 // pred_fallthru
          _
        %s380 = sand.u32 %s28, 1
        %s381 = scalar_lea.sflag [#allocation12], %s380
        %s382 = sand.u32 %s139, 1
        %s383 = smul.addr %s382, 16
        %s384 = scalar_lea.vmem [#allocation11], %s383
        // Predicated region
        $region53: #{tpu_custom_call.1} parent=39 // pred_check
          %p385 = pneg %p152
        $region54: #{tpu_custom_call.1} parent=39 // pred_check_branch
          %387 = sbr.rel (%p385) target = $region56
        $region55: #{tpu_custom_call.1} parent=39 // pred_region
          %389 = dma.done %s381, 256
        $region56: #{tpu_custom_call.1} parent=39 // pred_fallthru
          _
        %s390 = sand.u32 %s28, 1
        %s391 = scalar_lea.sflag [#allocation12], %s390
        %s392 = sand.u32 %s167, 1
        %s393 = smul.addr %s392, 16
        %s394 = scalar_lea.vmem [#allocation13], %s393
        // Predicated region
        $region57: #{tpu_custom_call.1} parent=39 // pred_check
          %p395 = pneg %p180
        $region58: #{tpu_custom_call.1} parent=39 // pred_check_branch
          %397 = sbr.rel (%p395) target = $region60
        $region59: #{tpu_custom_call.1} parent=39 // pred_region
          %399 = dma.done %s391, 256
        $region60: #{tpu_custom_call.1} parent=39 // pred_fallthru
          _
        %s400 = sand.u32 %s57, 1
        %s401 = scalar_lea.sflag [#allocation6], %s400
        %s402 = sand.u32 %s57, 1
        %s403 = smul.addr %s402, 128
        %s404 = scalar_lea.vmem [#allocation5], %s403
        %p405 = pneg %p70
        %p406 = pneg %p67
        %s407 = sand.u32 %s28, 1
        %s408 = scalar_lea.sflag [#allocation9], %s407
        %s409 = sand.u32 %s85, 1
        %s410 = smul.addr %s409, 128
        %s411 = scalar_lea.vmem [#allocation8], %s410
        %p412 = pneg %p98
        %p413 = pneg %p95
        %s414 = sand.u32 %s28, 1
        %s415 = scalar_lea.sflag [#allocation9], %s414
        %s416 = sand.u32 %s113, 1
        %s417 = smul.addr %s416, 128
        %s418 = scalar_lea.vmem [#allocation10], %s417
        %p419 = pneg %p126
        %p420 = pneg %p123
        %s421 = sand.u32 %s28, 1
        %s422 = scalar_lea.sflag [#allocation12], %s421
        %s423 = sand.u32 %s139, 1
        %s424 = smul.addr %s423, 16
        %s425 = scalar_lea.vmem [#allocation11], %s424
        %p426 = pneg %p152
        %p427 = pneg %p149
        %s428 = sand.u32 %s28, 1
        %s429 = scalar_lea.sflag [#allocation12], %s428
        %s430 = sand.u32 %s167, 1
        %s431 = smul.addr %s430, 16
        %s432 = scalar_lea.vmem [#allocation13], %s431
        %p433 = pneg %p180
        %p434 = pneg %p177
        %p435 = pneg %p208
        %p436 = pneg %p205
        %s437 = sand.u32 %s195, 1
        %s438 = scalar_lea.sflag [#allocation7], %s437
        %s439 = sand.u32 %s195, 1
        %s440 = smul.addr %s439, 128
        %s441 = scalar_lea.vmem [#allocation14], %s440
        %s442 = smul.u32 16, %s34
        %s443 = smul.u32 16, %s35
        %s444 = smul.u32 16, %s34
        %v445 = vld [vmem:[%s354] sm:$0xff]
        %v446 = vld [vmem:[%s354 + $0x8] sm:$0xff]
        %v447 = vld [vmem:[%s354 + $0x10] sm:$0xff]
        %v448 = vld [vmem:[%s354 + $0x18] sm:$0xff]
        %v449 = vld [vmem:[%s354 + $0x20] sm:$0xff]
        %v450 = vld [vmem:[%s354 + $0x28] sm:$0xff]
        %v451 = vld [vmem:[%s354 + $0x30] sm:$0xff]
        %v452 = vld [vmem:[%s354 + $0x38] sm:$0xff]
        %v453 = vld [vmem:[%s354 + $0x40] sm:$0xff]
        %v454 = vld [vmem:[%s354 + $0x48] sm:$0xff]
        %v455 = vld [vmem:[%s354 + $0x50] sm:$0xff]
        %v456 = vld [vmem:[%s354 + $0x58] sm:$0xff]
        %v457 = vld [vmem:[%s354 + $0x60] sm:$0xff]
        %v458 = vld [vmem:[%s354 + $0x68] sm:$0xff]
        %v459 = vld [vmem:[%s354 + $0x70] sm:$0xff]
        %v460 = vld [vmem:[%s354 + $0x78] sm:$0xff]
        %v461 = vld [vmem:[%s364] sm:$0xff]
        %v462 = vld [vmem:[%s364 + $0x8] sm:$0xff]
        %v463 = vld [vmem:[%s364 + $0x10] sm:$0xff]
        %v464 = vld [vmem:[%s364 + $0x18] sm:$0xff]
        %v465 = vld [vmem:[%s364 + $0x20] sm:$0xff]
        %v466 = vld [vmem:[%s364 + $0x28] sm:$0xff]
        %v467 = vld [vmem:[%s364 + $0x30] sm:$0xff]
        %v468 = vld [vmem:[%s364 + $0x38] sm:$0xff]
        %v469 = vld [vmem:[%s364 + $0x40] sm:$0xff]
        %v470 = vld [vmem:[%s364 + $0x48] sm:$0xff]
        %v471 = vld [vmem:[%s364 + $0x50] sm:$0xff]
        %v472 = vld [vmem:[%s364 + $0x58] sm:$0xff]
        %v473 = vld [vmem:[%s364 + $0x60] sm:$0xff]
        %v474 = vld [vmem:[%s364 + $0x68] sm:$0xff]
        %v475 = vld [vmem:[%s364 + $0x70] sm:$0xff]
        %v476 = vld [vmem:[%s364 + $0x78] sm:$0xff]
        %v477 = vld [vmem:[%s374] sm:$0xff]
        %v478 = vld [vmem:[%s374 + $0x8] sm:$0xff]
        %v479 = vld [vmem:[%s374 + $0x10] sm:$0xff]
        %v480 = vld [vmem:[%s374 + $0x18] sm:$0xff]
        %v481 = vld [vmem:[%s374 + $0x20] sm:$0xff]
        %v482 = vld [vmem:[%s374 + $0x28] sm:$0xff]
        %v483 = vld [vmem:[%s374 + $0x30] sm:$0xff]
        %v484 = vld [vmem:[%s374 + $0x38] sm:$0xff]
        %v485 = vld [vmem:[%s374 + $0x40] sm:$0xff]
        %v486 = vld [vmem:[%s374 + $0x48] sm:$0xff]
        %v487 = vld [vmem:[%s374 + $0x50] sm:$0xff]
        %v488 = vld [vmem:[%s374 + $0x58] sm:$0xff]
        %v489 = vld [vmem:[%s374 + $0x60] sm:$0xff]
        %v490 = vld [vmem:[%s374 + $0x68] sm:$0xff]
        %v491 = vld [vmem:[%s374 + $0x70] sm:$0xff]
        %v492 = vld [vmem:[%s374 + $0x78] sm:$0xff]
        %v493 = vld [vmem:[%s394] sm:$0xff]
        %v494 = vld [vmem:[%s394 + $0x8] sm:$0xff]
        %p495 = scmp.eq.s32.totalorder %s35, 0
        // Predicated region
        $region61: #{tpu_custom_call.1} parent=39 // pred_check
          %p496 = pneg %p495
        $region62: #{tpu_custom_call.1} parent=39 // pred_check_branch
          %498 = sbr.rel (%p496) target = $region64
        $region63: #{tpu_custom_call.1} parent=39 // pred_region
          %499 = vst [vmem:[#allocation2] sm:$0xff] 0.0
          %500 = vst [vmem:[#allocation2 + $0x8] sm:$0xff] 0.0
          %501 = vst [vmem:[#allocation2 + $0x10] sm:$0xff] 0.0
          %502 = vst [vmem:[#allocation2 + $0x18] sm:$0xff] 0.0
          %503 = vst [vmem:[#allocation2 + $0x20] sm:$0xff] 0.0
          %504 = vst [vmem:[#allocation2 + $0x28] sm:$0xff] 0.0
          %505 = vst [vmem:[#allocation2 + $0x30] sm:$0xff] 0.0
          %506 = vst [vmem:[#allocation2 + $0x38] sm:$0xff] 0.0
          %507 = vst [vmem:[#allocation2 + $0x40] sm:$0xff] 0.0
          %508 = vst [vmem:[#allocation2 + $0x48] sm:$0xff] 0.0
          %509 = vst [vmem:[#allocation2 + $0x50] sm:$0xff] 0.0
          %510 = vst [vmem:[#allocation2 + $0x58] sm:$0xff] 0.0
          %511 = vst [vmem:[#allocation2 + $0x60] sm:$0xff] 0.0
          %512 = vst [vmem:[#allocation2 + $0x68] sm:$0xff] 0.0
          %513 = vst [vmem:[#allocation2 + $0x70] sm:$0xff] 0.0
          %514 = vst [vmem:[#allocation2 + $0x78] sm:$0xff] 0.0
          %vm515 = vcmask 64512
          %516 = vst.msk [vmem:[#allocation4] sm:$0xff] %vm515, 0.0
          %517 = vst.msk [vmem:[#allocation4 + $0x8] sm:$0xff] %vm515, 0.0
          %518 = vst.msk [vmem:[#allocation4 + $0x10] sm:$0xff] %vm515, 0.0
          %519 = vst.msk [vmem:[#allocation4 + $0x18] sm:$0xff] %vm515, 0.0
          %520 = vst.msk [vmem:[#allocation4 + $0x20] sm:$0xff] %vm515, 0.0
          %521 = vst.msk [vmem:[#allocation4 + $0x28] sm:$0xff] %vm515, 0.0
          %522 = vst.msk [vmem:[#allocation4 + $0x30] sm:$0xff] %vm515, 0.0
          %523 = vst.msk [vmem:[#allocation4 + $0x38] sm:$0xff] %vm515, 0.0
          %524 = vst.msk [vmem:[#allocation4 + $0x40] sm:$0xff] %vm515, 0.0
          %525 = vst.msk [vmem:[#allocation4 + $0x48] sm:$0xff] %vm515, 0.0
          %526 = vst.msk [vmem:[#allocation4 + $0x50] sm:$0xff] %vm515, 0.0
          %527 = vst.msk [vmem:[#allocation4 + $0x58] sm:$0xff] %vm515, 0.0
          %528 = vst.msk [vmem:[#allocation4 + $0x60] sm:$0xff] %vm515, 0.0
          %529 = vst.msk [vmem:[#allocation4 + $0x68] sm:$0xff] %vm515, 0.0
          %530 = vst.msk [vmem:[#allocation4 + $0x70] sm:$0xff] %vm515, 0.0
          %531 = vst.msk [vmem:[#allocation4 + $0x78] sm:$0xff] %vm515, 0.0
          %v532 = vld [vmem:[%s384] sm:$0xff]
          %533 = vmatpush.xpose.msra.mxu0 0.0
          %534 = vmatpush.xpose.msra.mxu0 0.0
          %535 = vmatpush.xpose.msra.mxu0 0.0
          %536 = vmatpush.xpose.msra.mxu0 0.0
          %537 = vmatpush.xpose.msra.mxu0 0.0
          %538 = vmatpush.xpose.msra.mxu0 0.0
          %539 = vmatpush.xpose.msra.mxu0 0.0
          %540 = vmatpush.xpose.msra.mxu0 0.0
          %541 = vmatpush.xpose.msra.mxu0 0.0
          %542 = vmatpush.xpose.msra.mxu0 0.0
          %543 = vmatpush.xpose.msra.mxu0 0.0
          %544 = vmatpush.xpose.msra.mxu0 0.0
          %545 = vmatpush.xpose.msra.mxu0 0.0
          %546 = vmatpush.xpose.msra.mxu0 0.0
          %547 = vmatpush.xpose.msra.mxu0 0.0
          %548 = vmatpush.xpose.msra.mxu0 %v532
          %549 = vmatmul.f32.gmra.mxu0 %v445
          %v550 = vpop.f32.mrf.mxu0
          %v551 = vadd.f32 0.0, %v550
          %552 = vmatmul.f32.gmra.mxu0 %v446
          %v553 = vpop.f32.mrf.mxu0
          %v554 = vadd.f32 0.0, %v553
          %555 = vmatmul.f32.gmra.mxu0 %v447
          %v556 = vpop.f32.mrf.mxu0
          %v557 = vadd.f32 0.0, %v556
          %558 = vmatmul.f32.gmra.mxu0 %v448
          %v559 = vpop.f32.mrf.mxu0
          %v560 = vadd.f32 0.0, %v559
          %561 = vmatmul.f32.gmra.mxu0 %v449
          %v562 = vpop.f32.mrf.mxu0
          %v563 = vadd.f32 0.0, %v562
          %564 = vmatmul.f32.gmra.mxu0 %v450
          %v565 = vpop.f32.mrf.mxu0
          %v566 = vadd.f32 0.0, %v565
          %567 = vmatmul.f32.gmra.mxu0 %v451
          %v568 = vpop.f32.mrf.mxu0
          %v569 = vadd.f32 0.0, %v568
          %570 = vmatmul.f32.gmra.mxu0 %v452
          %v571 = vpop.f32.mrf.mxu0
          %v572 = vadd.f32 0.0, %v571
          %573 = vmatmul.f32.gmra.mxu0 %v453
          %v574 = vpop.f32.mrf.mxu0
          %v575 = vadd.f32 0.0, %v574
          %576 = vmatmul.f32.gmra.mxu0 %v454
          %v577 = vpop.f32.mrf.mxu0
          %v578 = vadd.f32 0.0, %v577
          %579 = vmatmul.f32.gmra.mxu0 %v455
          %v580 = vpop.f32.mrf.mxu0
          %v581 = vadd.f32 0.0, %v580
          %582 = vmatmul.f32.gmra.mxu0 %v456
          %v583 = vpop.f32.mrf.mxu0
          %v584 = vadd.f32 0.0, %v583
          %585 = vmatmul.f32.gmra.mxu0 %v457
          %v586 = vpop.f32.mrf.mxu0
          %v587 = vadd.f32 0.0, %v586
          %588 = vmatmul.f32.gmra.mxu0 %v458
          %v589 = vpop.f32.mrf.mxu0
          %v590 = vadd.f32 0.0, %v589
          %591 = vmatmul.f32.gmra.mxu0 %v459
          %v592 = vpop.f32.mrf.mxu0
          %v593 = vadd.f32 0.0, %v592
          %594 = vmatmul.f32.gmra.mxu0 %v460
          %v595 = vpop.f32.mrf.mxu0
          %v596 = vadd.f32 0.0, %v595
          %597 = vdwg.mxu0
          %598 = vst.msk [vmem:[#allocation3] sm:$0xff] %vm515, %v551
          %599 = vst.msk [vmem:[#allocation3 + $0x8] sm:$0xff] %vm515, %v554
          %600 = vst.msk [vmem:[#allocation3 + $0x10] sm:$0xff] %vm515, %v557
          %601 = vst.msk [vmem:[#allocation3 + $0x18] sm:$0xff] %vm515, %v560
          %602 = vst.msk [vmem:[#allocation3 + $0x20] sm:$0xff] %vm515, %v563
          %603 = vst.msk [vmem:[#allocation3 + $0x28] sm:$0xff] %vm515, %v566
          %604 = vst.msk [vmem:[#allocation3 + $0x30] sm:$0xff] %vm515, %v569
          %605 = vst.msk [vmem:[#allocation3 + $0x38] sm:$0xff] %vm515, %v572
          %606 = vst.msk [vmem:[#allocation3 + $0x40] sm:$0xff] %vm515, %v575
          %607 = vst.msk [vmem:[#allocation3 + $0x48] sm:$0xff] %vm515, %v578
          %608 = vst.msk [vmem:[#allocation3 + $0x50] sm:$0xff] %vm515, %v581
          %609 = vst.msk [vmem:[#allocation3 + $0x58] sm:$0xff] %vm515, %v584
          %610 = vst.msk [vmem:[#allocation3 + $0x60] sm:$0xff] %vm515, %v587
          %611 = vst.msk [vmem:[#allocation3 + $0x68] sm:$0xff] %vm515, %v590
          %612 = vst.msk [vmem:[#allocation3 + $0x70] sm:$0xff] %vm515, %v593
          %613 = vst.msk [vmem:[#allocation3 + $0x78] sm:$0xff] %vm515, %v596
        $region64: #{tpu_custom_call.1} parent=39 // pred_fallthru
          _
        %v614 = vld [vmem:[#allocation3] sm:$0xff]
        %v615 = vld [vmem:[#allocation3 + $0x8] sm:$0xff]
        %v616 = vld [vmem:[#allocation3 + $0x10] sm:$0xff]
        %v617 = vld [vmem:[#allocation3 + $0x18] sm:$0xff]
        %v618 = vld [vmem:[#allocation3 + $0x20] sm:$0xff]
        %v619 = vld [vmem:[#allocation3 + $0x28] sm:$0xff]
        %v620 = vld [vmem:[#allocation3 + $0x30] sm:$0xff]
        %v621 = vld [vmem:[#allocation3 + $0x38] sm:$0xff]
        %v622 = vld [vmem:[#allocation3 + $0x40] sm:$0xff]
        %v623 = vld [vmem:[#allocation3 + $0x48] sm:$0xff]
        %v624 = vld [vmem:[#allocation3 + $0x50] sm:$0xff]
        %v625 = vld [vmem:[#allocation3 + $0x58] sm:$0xff]
        %v626 = vld [vmem:[#allocation3 + $0x60] sm:$0xff]
        %v627 = vld [vmem:[#allocation3 + $0x68] sm:$0xff]
        %v628 = vld [vmem:[#allocation3 + $0x70] sm:$0xff]
        %v629 = vld [vmem:[#allocation3 + $0x78] sm:$0xff]
        %vm630 = vcmask 64512
        %v632 = vsel %vm630, %v614, 0
        %v635 = vsel %vm630, %v615, 0
        %v638 = vsel %vm630, %v616, 0
        %v641 = vsel %vm630, %v617, 0
        %v644 = vsel %vm630, %v618, 0
        %v647 = vsel %vm630, %v619, 0
        %v650 = vsel %vm630, %v620, 0
        %v653 = vsel %vm630, %v621, 0
        %v656 = vsel %vm630, %v622, 0
        %v659 = vsel %vm630, %v623, 0
        %v662 = vsel %vm630, %v624, 0
        %v665 = vsel %vm630, %v625, 0
        %v668 = vsel %vm630, %v626, 0
        %v671 = vsel %vm630, %v627, 0
        %v674 = vsel %vm630, %v628, 0
        %v677 = vsel %vm630, %v629, 0
        %679 = vmatpush.msra.mxu0 0.0
        %680 = vmatpush.msra.mxu0 0.0
        %681 = vmatpush.msra.mxu0 0.0
        %682 = vmatpush.msra.mxu0 0.0
        %683 = vmatpush.msra.mxu0 0.0
        %684 = vmatpush.msra.mxu0 0.0
        %685 = vmatpush.msra.mxu0 0.0
        %686 = vmatpush.msra.mxu0 0.0
        %687 = vmatpush.msra.mxu0 0.0
        %688 = vmatpush.msra.mxu0 0.0
        %689 = vmatpush.msra.mxu0 0.0
        %690 = vmatpush.msra.mxu0 0.0
        %691 = vmatpush.msra.mxu0 0.0
        %692 = vmatpush.msra.mxu0 0.0
        %693 = vmatpush.msra.mxu0 0.0
        %694 = vmatpush.msra.mxu0 %v493
        %695 = vmatmul.f32.gmra.mxu0 %v632
        %v696 = vpop.f32.mrf.mxu0
        %v697 = vadd.f32 0.0, %v696
        %698 = vmatmul.f32.gmra.mxu0 %v635
        %v699 = vpop.f32.mrf.mxu0
        %v700 = vadd.f32 0.0, %v699
        %701 = vmatmul.f32.gmra.mxu0 %v638
        %v702 = vpop.f32.mrf.mxu0
        %v703 = vadd.f32 0.0, %v702
        %704 = vmatmul.f32.gmra.mxu0 %v641
        %v705 = vpop.f32.mrf.mxu0
        %v706 = vadd.f32 0.0, %v705
        %707 = vmatmul.f32.gmra.mxu0 %v644
        %v708 = vpop.f32.mrf.mxu0
        %v709 = vadd.f32 0.0, %v708
        %710 = vmatmul.f32.gmra.mxu0 %v647
        %v711 = vpop.f32.mrf.mxu0
        %v712 = vadd.f32 0.0, %v711
        %713 = vmatmul.f32.gmra.mxu0 %v650
        %v714 = vpop.f32.mrf.mxu0
        %v715 = vadd.f32 0.0, %v714
        %716 = vmatmul.f32.gmra.mxu0 %v653
        %v717 = vpop.f32.mrf.mxu0
        %v718 = vadd.f32 0.0, %v717
        %719 = vmatmul.f32.gmra.mxu0 %v656
        %v720 = vpop.f32.mrf.mxu0
        %v721 = vadd.f32 0.0, %v720
        %722 = vmatmul.f32.gmra.mxu0 %v659
        %v723 = vpop.f32.mrf.mxu0
        %v724 = vadd.f32 0.0, %v723
        %725 = vmatmul.f32.gmra.mxu0 %v662
        %v726 = vpop.f32.mrf.mxu0
        %v727 = vadd.f32 0.0, %v726
        %728 = vmatmul.f32.gmra.mxu0 %v665
        %v729 = vpop.f32.mrf.mxu0
        %v730 = vadd.f32 0.0, %v729
        %731 = vmatmul.f32.gmra.mxu0 %v668
        %v732 = vpop.f32.mrf.mxu0
        %v733 = vadd.f32 0.0, %v732
        %734 = vmatmul.f32.gmra.mxu0 %v671
        %v735 = vpop.f32.mrf.mxu0
        %v736 = vadd.f32 0.0, %v735
        %737 = vmatmul.f32.gmra.mxu0 %v674
        %v738 = vpop.f32.mrf.mxu0
        %v739 = vadd.f32 0.0, %v738
        %740 = vmatmul.f32.gmra.mxu0 %v677
        %v741 = vpop.f32.mrf.mxu0
        %v742 = vadd.f32 0.0, %v741
        %743 = vdwg.mxu0
        %744 = vmatpush.msra.mxu0 %v476
        %745 = vmatpush.msra.mxu0 %v475
        %746 = vmatpush.msra.mxu0 %v474
        %747 = vmatpush.msra.mxu0 %v473
        %748 = vmatpush.msra.mxu0 %v472
        %749 = vmatpush.msra.mxu0 %v471
        %750 = vmatpush.msra.mxu0 %v470
        %751 = vmatpush.msra.mxu0 %v469
        %752 = vmatpush.msra.mxu0 %v468
        %753 = vmatpush.msra.mxu0 %v467
        %754 = vmatpush.msra.mxu0 %v466
        %755 = vmatpush.msra.mxu0 %v465
        %756 = vmatpush.msra.mxu0 %v464
        %757 = vmatpush.msra.mxu0 %v463
        %758 = vmatpush.msra.mxu0 %v462
        %759 = vmatpush.msra.mxu0 %v461
        %760 = vmatmul.f32.gmra.mxu0 %v445
        %v761 = vpop.f32.mrf.mxu0
        %v762 = vadd.f32 %v697, %v761
        %763 = vmatmul.f32.gmra.mxu0 %v446
        %v764 = vpop.f32.mrf.mxu0
        %v765 = vadd.f32 %v700, %v764
        %766 = vmatmul.f32.gmra.mxu0 %v447
        %v767 = vpop.f32.mrf.mxu0
        %v768 = vadd.f32 %v703, %v767
        %769 = vmatmul.f32.gmra.mxu0 %v448
        %v770 = vpop.f32.mrf.mxu0
        %v771 = vadd.f32 %v706, %v770
        %772 = vmatmul.f32.gmra.mxu0 %v449
        %v773 = vpop.f32.mrf.mxu0
        %v774 = vadd.f32 %v709, %v773
        %775 = vmatmul.f32.gmra.mxu0 %v450
        %v776 = vpop.f32.mrf.mxu0
        %v777 = vadd.f32 %v712, %v776
        %778 = vmatmul.f32.gmra.mxu0 %v451
        %v779 = vpop.f32.mrf.mxu0
        %v780 = vadd.f32 %v715, %v779
        %781 = vmatmul.f32.gmra.mxu0 %v452
        %v782 = vpop.f32.mrf.mxu0
        %v783 = vadd.f32 %v718, %v782
        %784 = vmatmul.f32.gmra.mxu0 %v453
        %v785 = vpop.f32.mrf.mxu0
        %v786 = vadd.f32 %v721, %v785
        %787 = vmatmul.f32.gmra.mxu0 %v454
        %v788 = vpop.f32.mrf.mxu0
        %v789 = vadd.f32 %v724, %v788
        %790 = vmatmul.f32.gmra.mxu0 %v455
        %v791 = vpop.f32.mrf.mxu0
        %v792 = vadd.f32 %v727, %v791
        %793 = vmatmul.f32.gmra.mxu0 %v456
        %v794 = vpop.f32.mrf.mxu0
        %v795 = vadd.f32 %v730, %v794
        %796 = vmatmul.f32.gmra.mxu0 %v457
        %v797 = vpop.f32.mrf.mxu0
        %v798 = vadd.f32 %v733, %v797
        %799 = vmatmul.f32.gmra.mxu0 %v458
        %v800 = vpop.f32.mrf.mxu0
        %v801 = vadd.f32 %v736, %v800
        %802 = vmatmul.f32.gmra.mxu0 %v459
        %v803 = vpop.f32.mrf.mxu0
        %v804 = vadd.f32 %v739, %v803
        %805 = vmatmul.f32.gmra.mxu0 %v460
        %v806 = vpop.f32.mrf.mxu0
        %v807 = vadd.f32 %v742, %v806
        %808 = vdwg.mxu0
        %v809 = vmul.f32 %v762, 0.5
        %v810 = vmul.f32 %v765, 0.5
        %v811 = vmul.f32 %v768, 0.5
        %v812 = vmul.f32 %v771, 0.5
        %v813 = vmul.f32 %v774, 0.5
        %v814 = vmul.f32 %v777, 0.5
        %v815 = vmul.f32 %v780, 0.5
        %v816 = vmul.f32 %v783, 0.5
        %v817 = vmul.f32 %v786, 0.5
        %v818 = vmul.f32 %v789, 0.5
        %v819 = vmul.f32 %v792, 0.5
        %v820 = vmul.f32 %v795, 0.5
        %v821 = vmul.f32 %v798, 0.5
        %v822 = vmul.f32 %v801, 0.5
        %v823 = vmul.f32 %v804, 0.5
        %v824 = vmul.f32 %v807, 0.5
        %v825 = vmul.f32 %v762, 0.044715
        %v826 = vmul.f32 %v765, 0.044715
        %v827 = vmul.f32 %v768, 0.044715
        %v828 = vmul.f32 %v771, 0.044715
        %v829 = vmul.f32 %v774, 0.044715
        %v830 = vmul.f32 %v777, 0.044715
        %v831 = vmul.f32 %v780, 0.044715
        %v832 = vmul.f32 %v783, 0.044715
        %v833 = vmul.f32 %v786, 0.044715
        %v834 = vmul.f32 %v789, 0.044715
        %v835 = vmul.f32 %v792, 0.044715
        %v836 = vmul.f32 %v795, 0.044715
        %v837 = vmul.f32 %v798, 0.044715
        %v838 = vmul.f32 %v801, 0.044715
        %v839 = vmul.f32 %v804, 0.044715
        %v840 = vmul.f32 %v807, 0.044715
        %v841 = vmul.f32 %v825, %v762
        %v842 = vmul.f32 %v826, %v765
        %v843 = vmul.f32 %v827, %v768
        %v844 = vmul.f32 %v828, %v771
        %v845 = vmul.f32 %v829, %v774
        %v846 = vmul.f32 %v830, %v777
        %v847 = vmul.f32 %v831, %v780
        %v848 = vmul.f32 %v832, %v783
        %v849 = vmul.f32 %v833, %v786
        %v850 = vmul.f32 %v834, %v789
        %v851 = vmul.f32 %v835, %v792
        %v852 = vmul.f32 %v836, %v795
        %v853 = vmul.f32 %v837, %v798
        %v854 = vmul.f32 %v838, %v801
        %v855 = vmul.f32 %v839, %v804
        %v856 = vmul.f32 %v840, %v807
        %v857 = vmul.f32 %v841, %v762
        %v858 = vmul.f32 %v842, %v765
        %v859 = vmul.f32 %v843, %v768
        %v860 = vmul.f32 %v844, %v771
        %v861 = vmul.f32 %v845, %v774
        %v862 = vmul.f32 %v846, %v777
        %v863 = vmul.f32 %v847, %v780
        %v864 = vmul.f32 %v848, %v783
        %v865 = vmul.f32 %v849, %v786
        %v866 = vmul.f32 %v850, %v789
        %v867 = vmul.f32 %v851, %v792
        %v868 = vmul.f32 %v852, %v795
        %v869 = vmul.f32 %v853, %v798
        %v870 = vmul.f32 %v854, %v801
        %v871 = vmul.f32 %v855, %v804
        %v872 = vmul.f32 %v856, %v807
        %v873 = vadd.f32 %v762, %v857
        %v874 = vadd.f32 %v765, %v858
        %v875 = vadd.f32 %v768, %v859
        %v876 = vadd.f32 %v771, %v860
        %v877 = vadd.f32 %v774, %v861
        %v878 = vadd.f32 %v777, %v862
        %v879 = vadd.f32 %v780, %v863
        %v880 = vadd.f32 %v783, %v864
        %v881 = vadd.f32 %v786, %v865
        %v882 = vadd.f32 %v789, %v866
        %v883 = vadd.f32 %v792, %v867
        %v884 = vadd.f32 %v795, %v868
        %v885 = vadd.f32 %v798, %v869
        %v886 = vadd.f32 %v801, %v870
        %v887 = vadd.f32 %v804, %v871
        %v888 = vadd.f32 %v807, %v872
        %v889 = vmul.f32 %v873, 0.7978846
        %v890 = vmul.f32 %v874, 0.7978846
        %v891 = vmul.f32 %v875, 0.7978846
        %v892 = vmul.f32 %v876, 0.7978846
        %v893 = vmul.f32 %v877, 0.7978846
        %v894 = vmul.f32 %v878, 0.7978846
        %v895 = vmul.f32 %v879, 0.7978846
        %v896 = vmul.f32 %v880, 0.7978846
        %v897 = vmul.f32 %v881, 0.7978846
        %v898 = vmul.f32 %v882, 0.7978846
        %v899 = vmul.f32 %v883, 0.7978846
        %v900 = vmul.f32 %v884, 0.7978846
        %v901 = vmul.f32 %v885, 0.7978846
        %v902 = vmul.f32 %v886, 0.7978846
        %v903 = vmul.f32 %v887, 0.7978846
        %v904 = vmul.f32 %v888, 0.7978846
        %v905 = vtanh.pop %v889
        %v906 = vtanh.pop %v890
        %v907 = vtanh.pop %v891
        %v908 = vtanh.pop %v892
        %v909 = vtanh.pop %v893
        %v910 = vtanh.pop %v894
        %v911 = vtanh.pop %v895
        %v912 = vtanh.pop %v896
        %v913 = vtanh.pop %v897
        %v914 = vtanh.pop %v898
        %v915 = vtanh.pop %v899
        %v916 = vtanh.pop %v900
        %v917 = vtanh.pop %v901
        %v918 = vtanh.pop %v902
        %v919 = vtanh.pop %v903
        %v920 = vtanh.pop %v904
        %v921 = vadd.f32 %v905, 1.0
        %v922 = vadd.f32 %v906, 1.0
        %v923 = vadd.f32 %v907, 1.0
        %v924 = vadd.f32 %v908, 1.0
        %v925 = vadd.f32 %v909, 1.0
        %v926 = vadd.f32 %v910, 1.0
        %v927 = vadd.f32 %v911, 1.0
        %v928 = vadd.f32 %v912, 1.0
        %v929 = vadd.f32 %v913, 1.0
        %v930 = vadd.f32 %v914, 1.0
        %v931 = vadd.f32 %v915, 1.0
        %v932 = vadd.f32 %v916, 1.0
        %v933 = vadd.f32 %v917, 1.0
        %v934 = vadd.f32 %v918, 1.0
        %v935 = vadd.f32 %v919, 1.0
        %v936 = vadd.f32 %v920, 1.0
        %v937 = vmul.f32 %v809, %v921
        %v938 = vmul.f32 %v810, %v922
        %v939 = vmul.f32 %v811, %v923
        %v940 = vmul.f32 %v812, %v924
        %v941 = vmul.f32 %v813, %v925
        %v942 = vmul.f32 %v814, %v926
        %v943 = vmul.f32 %v815, %v927
        %v944 = vmul.f32 %v816, %v928
        %v945 = vmul.f32 %v817, %v929
        %v946 = vmul.f32 %v818, %v930
        %v947 = vmul.f32 %v819, %v931
        %v948 = vmul.f32 %v820, %v932
        %v949 = vmul.f32 %v821, %v933
        %v950 = vmul.f32 %v822, %v934
        %v951 = vmul.f32 %v823, %v935
        %v952 = vmul.f32 %v824, %v936
        %v953 = vld [vmem:[#allocation2] sm:$0xff]
        %v954 = vld [vmem:[#allocation2 + $0x8] sm:$0xff]
        %v955 = vld [vmem:[#allocation2 + $0x10] sm:$0xff]
        %v956 = vld [vmem:[#allocation2 + $0x18] sm:$0xff]
        %v957 = vld [vmem:[#allocation2 + $0x20] sm:$0xff]
        %v958 = vld [vmem:[#allocation2 + $0x28] sm:$0xff]
        %v959 = vld [vmem:[#allocation2 + $0x30] sm:$0xff]
        %v960 = vld [vmem:[#allocation2 + $0x38] sm:$0xff]
        %v961 = vld [vmem:[#allocation2 + $0x40] sm:$0xff]
        %v962 = vld [vmem:[#allocation2 + $0x48] sm:$0xff]
        %v963 = vld [vmem:[#allocation2 + $0x50] sm:$0xff]
        %v964 = vld [vmem:[#allocation2 + $0x58] sm:$0xff]
        %v965 = vld [vmem:[#allocation2 + $0x60] sm:$0xff]
        %v966 = vld [vmem:[#allocation2 + $0x68] sm:$0xff]
        %v967 = vld [vmem:[#allocation2 + $0x70] sm:$0xff]
        %v968 = vld [vmem:[#allocation2 + $0x78] sm:$0xff]
        %969 = vmatpush.msra.mxu0 %v492
        %970 = vmatpush.msra.mxu0 %v491
        %971 = vmatpush.msra.mxu0 %v490
        %972 = vmatpush.msra.mxu0 %v489
        %973 = vmatpush.msra.mxu0 %v488
        %974 = vmatpush.msra.mxu0 %v487
        %975 = vmatpush.msra.mxu0 %v486
        %976 = vmatpush.msra.mxu0 %v485
        %977 = vmatpush.msra.mxu0 %v484
        %978 = vmatpush.msra.mxu0 %v483
        %979 = vmatpush.msra.mxu0 %v482
        %980 = vmatpush.msra.mxu0 %v481
        %981 = vmatpush.msra.mxu0 %v480
        %982 = vmatpush.msra.mxu0 %v479
        %983 = vmatpush.msra.mxu0 %v478
        %984 = vmatpush.msra.mxu0 %v477
        %985 = vmatmul.f32.gmra.mxu0 %v937
        %v986 = vpop.f32.mrf.mxu0
        %v987 = vadd.f32 0.0, %v986
        %988 = vmatmul.f32.gmra.mxu0 %v938
        %v989 = vpop.f32.mrf.mxu0
        %v990 = vadd.f32 0.0, %v989
        %991 = vmatmul.f32.gmra.mxu0 %v939
        %v992 = vpop.f32.mrf.mxu0
        %v993 = vadd.f32 0.0, %v992
        %994 = vmatmul.f32.gmra.mxu0 %v940
        %v995 = vpop.f32.mrf.mxu0
        %v996 = vadd.f32 0.0, %v995
        %997 = vmatmul.f32.gmra.mxu0 %v941
        %v998 = vpop.f32.mrf.mxu0
        %v999 = vadd.f32 0.0, %v998
        %1000 = vmatmul.f32.gmra.mxu0 %v942
        %v1001 = vpop.f32.mrf.mxu0
        %v1002 = vadd.f32 0.0, %v1001
        %1003 = vmatmul.f32.gmra.mxu0 %v943
        %v1004 = vpop.f32.mrf.mxu0
        %v1005 = vadd.f32 0.0, %v1004
        %1006 = vmatmul.f32.gmra.mxu0 %v944
        %v1007 = vpop.f32.mrf.mxu0
        %v1008 = vadd.f32 0.0, %v1007
        %1009 = vmatmul.f32.gmra.mxu0 %v945
        %v1010 = vpop.f32.mrf.mxu0
        %v1011 = vadd.f32 0.0, %v1010
        %1012 = vmatmul.f32.gmra.mxu0 %v946
        %v1013 = vpop.f32.mrf.mxu0
        %v1014 = vadd.f32 0.0, %v1013
        %1015 = vmatmul.f32.gmra.mxu0 %v947
        %v1016 = vpop.f32.mrf.mxu0
        %v1017 = vadd.f32 0.0, %v1016
        %1018 = vmatmul.f32.gmra.mxu0 %v948
        %v1019 = vpop.f32.mrf.mxu0
        %v1020 = vadd.f32 0.0, %v1019
        %1021 = vmatmul.f32.gmra.mxu0 %v949
        %v1022 = vpop.f32.mrf.mxu0
        %v1023 = vadd.f32 0.0, %v1022
        %1024 = vmatmul.f32.gmra.mxu0 %v950
        %v1025 = vpop.f32.mrf.mxu0
        %v1026 = vadd.f32 0.0, %v1025
        %1027 = vmatmul.f32.gmra.mxu0 %v951
        %v1028 = vpop.f32.mrf.mxu0
        %v1029 = vadd.f32 0.0, %v1028
        %1030 = vmatmul.f32.gmra.mxu0 %v952
        %v1031 = vpop.f32.mrf.mxu0
        %v1032 = vadd.f32 0.0, %v1031
        %1033 = vdwg.mxu0
        %v1034 = vadd.f32 %v953, %v987
        %v1035 = vadd.f32 %v954, %v990
        %v1036 = vadd.f32 %v955, %v993
        %v1037 = vadd.f32 %v956, %v996
        %v1038 = vadd.f32 %v957, %v999
        %v1039 = vadd.f32 %v958, %v1002
        %v1040 = vadd.f32 %v959, %v1005
        %v1041 = vadd.f32 %v960, %v1008
        %v1042 = vadd.f32 %v961, %v1011
        %v1043 = vadd.f32 %v962, %v1014
        %v1044 = vadd.f32 %v963, %v1017
        %v1045 = vadd.f32 %v964, %v1020
        %v1046 = vadd.f32 %v965, %v1023
        %v1047 = vadd.f32 %v966, %v1026
        %v1048 = vadd.f32 %v967, %v1029
        %v1049 = vadd.f32 %v968, %v1032
        %1050 = vst [vmem:[#allocation2] sm:$0xff] %v1034
        %1051 = vst [vmem:[#allocation2 + $0x8] sm:$0xff] %v1035
        %1052 = vst [vmem:[#allocation2 + $0x10] sm:$0xff] %v1036
        %1053 = vst [vmem:[#allocation2 + $0x18] sm:$0xff] %v1037
        %1054 = vst [vmem:[#allocation2 + $0x20] sm:$0xff] %v1038
        %1055 = vst [vmem:[#allocation2 + $0x28] sm:$0xff] %v1039
        %1056 = vst [vmem:[#allocation2 + $0x30] sm:$0xff] %v1040
        %1057 = vst [vmem:[#allocation2 + $0x38] sm:$0xff] %v1041
        %1058 = vst [vmem:[#allocation2 + $0x40] sm:$0xff] %v1042
        %1059 = vst [vmem:[#allocation2 + $0x48] sm:$0xff] %v1043
        %1060 = vst [vmem:[#allocation2 + $0x50] sm:$0xff] %v1044
        %1061 = vst [vmem:[#allocation2 + $0x58] sm:$0xff] %v1045
        %1062 = vst [vmem:[#allocation2 + $0x60] sm:$0xff] %v1046
        %1063 = vst [vmem:[#allocation2 + $0x68] sm:$0xff] %v1047
        %1064 = vst [vmem:[#allocation2 + $0x70] sm:$0xff] %v1048
        %1065 = vst [vmem:[#allocation2 + $0x78] sm:$0xff] %v1049
        %v1066 = vld [vmem:[#allocation4] sm:$0xff]
        %v1067 = vld [vmem:[#allocation4 + $0x8] sm:$0xff]
        %v1068 = vld [vmem:[#allocation4 + $0x10] sm:$0xff]
        %v1069 = vld [vmem:[#allocation4 + $0x18] sm:$0xff]
        %v1070 = vld [vmem:[#allocation4 + $0x20] sm:$0xff]
        %v1071 = vld [vmem:[#allocation4 + $0x28] sm:$0xff]
        %v1072 = vld [vmem:[#allocation4 + $0x30] sm:$0xff]
        %v1073 = vld [vmem:[#allocation4 + $0x38] sm:$0xff]
        %v1074 = vld [vmem:[#allocation4 + $0x40] sm:$0xff]
        %v1075 = vld [vmem:[#allocation4 + $0x48] sm:$0xff]
        %v1076 = vld [vmem:[#allocation4 + $0x50] sm:$0xff]
        %v1077 = vld [vmem:[#allocation4 + $0x58] sm:$0xff]
        %v1078 = vld [vmem:[#allocation4 + $0x60] sm:$0xff]
        %v1079 = vld [vmem:[#allocation4 + $0x68] sm:$0xff]
        %v1080 = vld [vmem:[#allocation4 + $0x70] sm:$0xff]
        %v1081 = vld [vmem:[#allocation4 + $0x78] sm:$0xff]
        %1082 = vmatpush.xpose.msra.mxu0 0.0
        %1083 = vmatpush.xpose.msra.mxu0 0.0
        %1084 = vmatpush.xpose.msra.mxu0 0.0
        %1085 = vmatpush.xpose.msra.mxu0 0.0
        %1086 = vmatpush.xpose.msra.mxu0 0.0
        %1087 = vmatpush.xpose.msra.mxu0 0.0
        %1088 = vmatpush.xpose.msra.mxu0 0.0
        %1089 = vmatpush.xpose.msra.mxu0 0.0
        %1090 = vmatpush.xpose.msra.mxu0 0.0
        %1091 = vmatpush.xpose.msra.mxu0 0.0
        %1092 = vmatpush.xpose.msra.mxu0 0.0
        %1093 = vmatpush.xpose.msra.mxu0 0.0
        %1094 = vmatpush.xpose.msra.mxu0 0.0
        %1095 = vmatpush.xpose.msra.mxu0 0.0
        %1096 = vmatpush.xpose.msra.mxu0 0.0
        %1097 = vmatpush.xpose.msra.mxu0 %v494
        %1098 = vmatmul.f32.gmra.mxu0 %v937
        %v1099 = vpop.f32.mrf.mxu0
        %v1100 = vadd.f32 0.0, %v1099
        %1101 = vmatmul.f32.gmra.mxu0 %v938
        %v1102 = vpop.f32.mrf.mxu0
        %v1103 = vadd.f32 0.0, %v1102
        %1104 = vmatmul.f32.gmra.mxu0 %v939
        %v1105 = vpop.f32.mrf.mxu0
        %v1106 = vadd.f32 0.0, %v1105
        %1107 = vmatmul.f32.gmra.mxu0 %v940
        %v1108 = vpop.f32.mrf.mxu0
        %v1109 = vadd.f32 0.0, %v1108
        %1110 = vmatmul.f32.gmra.mxu0 %v941
        %v1111 = vpop.f32.mrf.mxu0
        %v1112 = vadd.f32 0.0, %v1111
        %1113 = vmatmul.f32.gmra.mxu0 %v942
        %v1114 = vpop.f32.mrf.mxu0
        %v1115 = vadd.f32 0.0, %v1114
        %1116 = vmatmul.f32.gmra.mxu0 %v943
        %v1117 = vpop.f32.mrf.mxu0
        %v1118 = vadd.f32 0.0, %v1117
        %1119 = vmatmul.f32.gmra.mxu0 %v944
        %v1120 = vpop.f32.mrf.mxu0
        %v1121 = vadd.f32 0.0, %v1120
        %1122 = vmatmul.f32.gmra.mxu0 %v945
        %v1123 = vpop.f32.mrf.mxu0
        %v1124 = vadd.f32 0.0, %v1123
        %1125 = vmatmul.f32.gmra.mxu0 %v946
        %v1126 = vpop.f32.mrf.mxu0
        %v1127 = vadd.f32 0.0, %v1126
        %1128 = vmatmul.f32.gmra.mxu0 %v947
        %v1129 = vpop.f32.mrf.mxu0
        %v1130 = vadd.f32 0.0, %v1129
        %1131 = vmatmul.f32.gmra.mxu0 %v948
        %v1132 = vpop.f32.mrf.mxu0
        %v1133 = vadd.f32 0.0, %v1132
        %1134 = vmatmul.f32.gmra.mxu0 %v949
        %v1135 = vpop.f32.mrf.mxu0
        %v1136 = vadd.f32 0.0, %v1135
        %1137 = vmatmul.f32.gmra.mxu0 %v950
        %v1138 = vpop.f32.mrf.mxu0
        %v1139 = vadd.f32 0.0, %v1138
        %1140 = vmatmul.f32.gmra.mxu0 %v951
        %v1141 = vpop.f32.mrf.mxu0
        %v1142 = vadd.f32 0.0, %v1141
        %1143 = vmatmul.f32.gmra.mxu0 %v952
        %v1144 = vpop.f32.mrf.mxu0
        %v1145 = vadd.f32 0.0, %v1144
        %1146 = vdwg.mxu0
        %v1147 = vadd.f32 %v1066, %v1100
        %v1148 = vadd.f32 %v1067, %v1103
        %v1149 = vadd.f32 %v1068, %v1106
        %v1150 = vadd.f32 %v1069, %v1109
        %v1151 = vadd.f32 %v1070, %v1112
        %v1152 = vadd.f32 %v1071, %v1115
        %v1153 = vadd.f32 %v1072, %v1118
        %v1154 = vadd.f32 %v1073, %v1121
        %v1155 = vadd.f32 %v1074, %v1124
        %v1156 = vadd.f32 %v1075, %v1127
        %v1157 = vadd.f32 %v1076, %v1130
        %v1158 = vadd.f32 %v1077, %v1133
        %v1159 = vadd.f32 %v1078, %v1136
        %v1160 = vadd.f32 %v1079, %v1139
        %v1161 = vadd.f32 %v1080, %v1142
        %v1162 = vadd.f32 %v1081, %v1145
        %1163 = vst.msk [vmem:[#allocation4] sm:$0xff] %vm630, %v1147
        %1164 = vst.msk [vmem:[#allocation4 + $0x8] sm:$0xff] %vm630, %v1148
        %1165 = vst.msk [vmem:[#allocation4 + $0x10] sm:$0xff] %vm630, %v1149
        %1166 = vst.msk [vmem:[#allocation4 + $0x18] sm:$0xff] %vm630, %v1150
        %1167 = vst.msk [vmem:[#allocation4 + $0x20] sm:$0xff] %vm630, %v1151
        %1168 = vst.msk [vmem:[#allocation4 + $0x28] sm:$0xff] %vm630, %v1152
        %1169 = vst.msk [vmem:[#allocation4 + $0x30] sm:$0xff] %vm630, %v1153
        %1170 = vst.msk [vmem:[#allocation4 + $0x38] sm:$0xff] %vm630, %v1154
        %1171 = vst.msk [vmem:[#allocation4 + $0x40] sm:$0xff] %vm630, %v1155
        %1172 = vst.msk [vmem:[#allocation4 + $0x48] sm:$0xff] %vm630, %v1156
        %1173 = vst.msk [vmem:[#allocation4 + $0x50] sm:$0xff] %vm630, %v1157
        %1174 = vst.msk [vmem:[#allocation4 + $0x58] sm:$0xff] %vm630, %v1158
        %1175 = vst.msk [vmem:[#allocation4 + $0x60] sm:$0xff] %vm630, %v1159
        %1176 = vst.msk [vmem:[#allocation4 + $0x68] sm:$0xff] %vm630, %v1160
        %1177 = vst.msk [vmem:[#allocation4 + $0x70] sm:$0xff] %vm630, %v1161
        %1178 = vst.msk [vmem:[#allocation4 + $0x78] sm:$0xff] %vm630, %v1162
        %p1179 = scmp.eq.s32.totalorder %s35, 1
        // Predicated region
        $region65: #{tpu_custom_call.1} parent=39 // pred_check
          %p1180 = pneg %p1179
        $region66: #{tpu_custom_call.1} parent=39 // pred_check_branch
          %1182 = sbr.rel (%p1180) target = $region68
        $region67: #{tpu_custom_call.1} parent=39 // pred_region
          %v1183 = vld [vmem:[%s384 + $0x8] sm:$0xff]
          %v1184 = vld [vmem:[#allocation4] sm:$0xff]
          %v1185 = vld [vmem:[#allocation4 + $0x8] sm:$0xff]
          %v1186 = vld [vmem:[#allocation4 + $0x10] sm:$0xff]
          %v1187 = vld [vmem:[#allocation4 + $0x18] sm:$0xff]
          %v1188 = vld [vmem:[#allocation4 + $0x20] sm:$0xff]
          %v1189 = vld [vmem:[#allocation4 + $0x28] sm:$0xff]
          %v1190 = vld [vmem:[#allocation4 + $0x30] sm:$0xff]
          %v1191 = vld [vmem:[#allocation4 + $0x38] sm:$0xff]
          %v1192 = vld [vmem:[#allocation4 + $0x40] sm:$0xff]
          %v1193 = vld [vmem:[#allocation4 + $0x48] sm:$0xff]
          %v1194 = vld [vmem:[#allocation4 + $0x50] sm:$0xff]
          %v1195 = vld [vmem:[#allocation4 + $0x58] sm:$0xff]
          %v1196 = vld [vmem:[#allocation4 + $0x60] sm:$0xff]
          %v1197 = vld [vmem:[#allocation4 + $0x68] sm:$0xff]
          %v1198 = vld [vmem:[#allocation4 + $0x70] sm:$0xff]
          %v1199 = vld [vmem:[#allocation4 + $0x78] sm:$0xff]
          %v1201 = vsel %vm630, %v1184, 0
          %v1204 = vsel %vm630, %v1185, 0
          %v1207 = vsel %vm630, %v1186, 0
          %v1210 = vsel %vm630, %v1187, 0
          %v1213 = vsel %vm630, %v1188, 0
          %v1216 = vsel %vm630, %v1189, 0
          %v1219 = vsel %vm630, %v1190, 0
          %v1222 = vsel %vm630, %v1191, 0
          %v1225 = vsel %vm630, %v1192, 0
          %v1228 = vsel %vm630, %v1193, 0
          %v1231 = vsel %vm630, %v1194, 0
          %v1234 = vsel %vm630, %v1195, 0
          %v1237 = vsel %vm630, %v1196, 0
          %v1240 = vsel %vm630, %v1197, 0
          %v1243 = vsel %vm630, %v1198, 0
          %v1246 = vsel %vm630, %v1199, 0
          %1248 = vmatpush.msra.mxu0 0.0
          %1249 = vmatpush.msra.mxu0 0.0
          %1250 = vmatpush.msra.mxu0 0.0
          %1251 = vmatpush.msra.mxu0 0.0
          %1252 = vmatpush.msra.mxu0 0.0
          %1253 = vmatpush.msra.mxu0 0.0
          %1254 = vmatpush.msra.mxu0 0.0
          %1255 = vmatpush.msra.mxu0 0.0
          %1256 = vmatpush.msra.mxu0 0.0
          %1257 = vmatpush.msra.mxu0 0.0
          %1258 = vmatpush.msra.mxu0 0.0
          %1259 = vmatpush.msra.mxu0 0.0
          %1260 = vmatpush.msra.mxu0 0.0
          %1261 = vmatpush.msra.mxu0 0.0
          %1262 = vmatpush.msra.mxu0 0.0
          %1263 = vmatpush.msra.mxu0 %v1183
          %1264 = vmatmul.f32.gmra.mxu0 %v1201
          %v1265 = vpop.f32.mrf.mxu0
          %v1266 = vadd.f32 0.0, %v1265
          %1267 = vmatmul.f32.gmra.mxu0 %v1204
          %v1268 = vpop.f32.mrf.mxu0
          %v1269 = vadd.f32 0.0, %v1268
          %1270 = vmatmul.f32.gmra.mxu0 %v1207
          %v1271 = vpop.f32.mrf.mxu0
          %v1272 = vadd.f32 0.0, %v1271
          %1273 = vmatmul.f32.gmra.mxu0 %v1210
          %v1274 = vpop.f32.mrf.mxu0
          %v1275 = vadd.f32 0.0, %v1274
          %1276 = vmatmul.f32.gmra.mxu0 %v1213
          %v1277 = vpop.f32.mrf.mxu0
          %v1278 = vadd.f32 0.0, %v1277
          %1279 = vmatmul.f32.gmra.mxu0 %v1216
          %v1280 = vpop.f32.mrf.mxu0
          %v1281 = vadd.f32 0.0, %v1280
          %1282 = vmatmul.f32.gmra.mxu0 %v1219
          %v1283 = vpop.f32.mrf.mxu0
          %v1284 = vadd.f32 0.0, %v1283
          %1285 = vmatmul.f32.gmra.mxu0 %v1222
          %v1286 = vpop.f32.mrf.mxu0
          %v1287 = vadd.f32 0.0, %v1286
          %1288 = vmatmul.f32.gmra.mxu0 %v1225
          %v1289 = vpop.f32.mrf.mxu0
          %v1290 = vadd.f32 0.0, %v1289
          %1291 = vmatmul.f32.gmra.mxu0 %v1228
          %v1292 = vpop.f32.mrf.mxu0
          %v1293 = vadd.f32 0.0, %v1292
          %1294 = vmatmul.f32.gmra.mxu0 %v1231
          %v1295 = vpop.f32.mrf.mxu0
          %v1296 = vadd.f32 0.0, %v1295
          %1297 = vmatmul.f32.gmra.mxu0 %v1234
          %v1298 = vpop.f32.mrf.mxu0
          %v1299 = vadd.f32 0.0, %v1298
          %1300 = vmatmul.f32.gmra.mxu0 %v1237
          %v1301 = vpop.f32.mrf.mxu0
          %v1302 = vadd.f32 0.0, %v1301
          %1303 = vmatmul.f32.gmra.mxu0 %v1240
          %v1304 = vpop.f32.mrf.mxu0
          %v1305 = vadd.f32 0.0, %v1304
          %1306 = vmatmul.f32.gmra.mxu0 %v1243
          %v1307 = vpop.f32.mrf.mxu0
          %v1308 = vadd.f32 0.0, %v1307
          %1309 = vmatmul.f32.gmra.mxu0 %v1246
          %v1310 = vpop.f32.mrf.mxu0
          %v1311 = vadd.f32 0.0, %v1310
          %1312 = vdwg.mxu0
          %v1313 = vld [vmem:[#allocation2] sm:$0xff]
          %v1314 = vld [vmem:[#allocation2 + $0x8] sm:$0xff]
          %v1315 = vld [vmem:[#allocation2 + $0x10] sm:$0xff]
          %v1316 = vld [vmem:[#allocation2 + $0x18] sm:$0xff]
          %v1317 = vld [vmem:[#allocation2 + $0x20] sm:$0xff]
          %v1318 = vld [vmem:[#allocation2 + $0x28] sm:$0xff]
          %v1319 = vld [vmem:[#allocation2 + $0x30] sm:$0xff]
          %v1320 = vld [vmem:[#allocation2 + $0x38] sm:$0xff]
          %v1321 = vld [vmem:[#allocation2 + $0x40] sm:$0xff]
          %v1322 = vld [vmem:[#allocation2 + $0x48] sm:$0xff]
          %v1323 = vld [vmem:[#allocation2 + $0x50] sm:$0xff]
          %v1324 = vld [vmem:[#allocation2 + $0x58] sm:$0xff]
          %v1325 = vld [vmem:[#allocation2 + $0x60] sm:$0xff]
          %v1326 = vld [vmem:[#allocation2 + $0x68] sm:$0xff]
          %v1327 = vld [vmem:[#allocation2 + $0x70] sm:$0xff]
          %v1328 = vld [vmem:[#allocation2 + $0x78] sm:$0xff]
          %v1329 = vadd.f32 %v1313, %v1266
          %v1330 = vadd.f32 %v1314, %v1269
          %v1331 = vadd.f32 %v1315, %v1272
          %v1332 = vadd.f32 %v1316, %v1275
          %v1333 = vadd.f32 %v1317, %v1278
          %v1334 = vadd.f32 %v1318, %v1281
          %v1335 = vadd.f32 %v1319, %v1284
          %v1336 = vadd.f32 %v1320, %v1287
          %v1337 = vadd.f32 %v1321, %v1290
          %v1338 = vadd.f32 %v1322, %v1293
          %v1339 = vadd.f32 %v1323, %v1296
          %v1340 = vadd.f32 %v1324, %v1299
          %v1341 = vadd.f32 %v1325, %v1302
          %v1342 = vadd.f32 %v1326, %v1305
          %v1343 = vadd.f32 %v1327, %v1308
          %v1344 = vadd.f32 %v1328, %v1311
          %1345 = vst [vmem:[%s441] sm:$0xff] %v1329
          %1346 = vst [vmem:[%s441 + $0x8] sm:$0xff] %v1330
          %1347 = vst [vmem:[%s441 + $0x10] sm:$0xff] %v1331
          %1348 = vst [vmem:[%s441 + $0x18] sm:$0xff] %v1332
          %1349 = vst [vmem:[%s441 + $0x20] sm:$0xff] %v1333
          %1350 = vst [vmem:[%s441 + $0x28] sm:$0xff] %v1334
          %1351 = vst [vmem:[%s441 + $0x30] sm:$0xff] %v1335
          %1352 = vst [vmem:[%s441 + $0x38] sm:$0xff] %v1336
          %1353 = vst [vmem:[%s441 + $0x40] sm:$0xff] %v1337
          %1354 = vst [vmem:[%s441 + $0x48] sm:$0xff] %v1338
          %1355 = vst [vmem:[%s441 + $0x50] sm:$0xff] %v1339
          %1356 = vst [vmem:[%s441 + $0x58] sm:$0xff] %v1340
          %1357 = vst [vmem:[%s441 + $0x60] sm:$0xff] %v1341
          %1358 = vst [vmem:[%s441 + $0x68] sm:$0xff] %v1342
          %1359 = vst [vmem:[%s441 + $0x70] sm:$0xff] %v1343
          %1360 = vst [vmem:[%s441 + $0x78] sm:$0xff] %v1344
        $region68: #{tpu_custom_call.1} parent=39 // pred_fallthru
          _
        %s1361 = sand.u32 %s195, 1
        %s1362 = scalar_lea.sflag [#allocation7], %s1361
        %s1363 = sand.u32 %s195, 1
        %s1364 = smul.addr %s1363, 128
        %s1365 = scalar_lea.vmem [#allocation14], %s1364
        // Predicated region
        $region69: #{tpu_custom_call.1} parent=39 // pred_check
          %p1366 = pneg %p205
        $region70: #{tpu_custom_call.1} parent=39 // pred_check_branch
          %1368 = sbr.rel (%p1366) target = $region72
        $region71: #{tpu_custom_call.1} parent=39 // pred_region
          %s1369 = smul.u32 16, %s34
          %1371 = vsyncadd %s1362, 0
          %s1372 = smul.addr %s33, 32
          %s1373 = sadd.s32 %s1369, %s1372
          %s1374 = smul.addr %s1373, 8
          %s1375 = scalar_lea.hbm %s5, %s1374
          %s1376 = sshll.u32 %s1365, 4
          %s1377 = int_to_ptr.vmem [resolvable:$true] %s1376
          %s1378 = sshll.u32 %s1375, 4
          %s1379 = int_to_ptr.hbm [resolvable:$true] %s1378
          %1384 = dma.vmem_to_hbm [thread:$0]  %s1377, 2048, %s1379, %s1362, 128, 128, 8
        $region72: #{tpu_custom_call.1} parent=39 // pred_fallthru
          _
      $region40: #{tpu_custom_call.1} parent=5 // pred_fallthru
        _
      %p1385 = scmp.le.s32.totalorder 2, %s23
      // Predicated region
      $region73: #{tpu_custom_call.1} parent=5 // pred_check
        %p1386 = pneg %p1385
      $region74: #{tpu_custom_call.1} parent=5 // pred_check_branch
        %1388 = sbr.rel (%p1386) target = $region76
      $region75: #{tpu_custom_call.1} parent=5 // pred_region
        %s1389 = ssub.s32 %s23, 2
        // Predicated region
        $region77: #{tpu_custom_call.1} parent=75 // pred_check
          %p1390 = pneg %p211
        $region78: #{tpu_custom_call.1} parent=75 // pred_check_branch
          %1392 = sbr.rel (%p1390) target = $region80
        $region79: #{tpu_custom_call.1} parent=75 // pred_region
          %s1393 = sand.u32 %s196, 1
          %s1394 = scalar_lea.sflag [#allocation7], %s1393
          %s1395 = sand.u32 %s196, 1
          %s1396 = smul.addr %s1395, 128
          %s1397 = scalar_lea.vmem [#allocation14], %s1396
          %1399 = dma.done %s1394, 2048
        $region80: #{tpu_custom_call.1} parent=75 // pred_fallthru
          _
      $region76: #{tpu_custom_call.1} parent=5 // pred_fallthru
        _
    $region6: #{tpu_custom_call.1} parent=1 // loop_footer
      %s27 = sadd.s32 1, %s23
    $region7: #{tpu_custom_call.1} parent=1 // loop_footer_branch
      %22 = sbr.rel target = $region3
    $region8: #{tpu_custom_call.1} parent=1 // loop_exit
      _
    %1400 = vsyncpa [#allocation6], 1
    %s1401 = scalar_lea.sflag [#allocation6], 1
    %1402 = vsyncpa %s1401, 1
    %1403 = vsyncpa [#allocation9], 1
    %s1404 = scalar_lea.sflag [#allocation9], 1
    %1405 = vsyncpa %s1404, 1
    %1406 = vsyncpa [#allocation12], 1
    %s1407 = scalar_lea.sflag [#allocation12], 1
    %1408 = vsyncpa %s1407, 1
    %1409 = vsyncpa [#allocation7], 1
    %s1410 = scalar_lea.sflag [#allocation7], 1
    %1411 = vsyncpa %s1410, 1

</llo_original>
